<compile_context>
chip_gen: v7x
topology: tpu7x:2x2x1
jax: 0.10.0
libtpu: 0.0.40
codegen_flags: <defaults>
</compile_context>

<pallas_src>
import functools

import numpy as np
import jax
import jax.numpy as jnp
from jax.experimental import pallas as pl
from jax.experimental.pallas import tpu as pltpu

LANE = 128
SUBLANE = 8
VMEM_LIMIT = 32 * 1024 * 1024   # safe on v5e/v6e (128 MiB) and v7x (64 MiB)


def _round_up(x, m):
    return ((x + m - 1) // m) * m


def _pad2d(x, rows, cols):
    r, c = x.shape
    return jnp.pad(x, ((0, rows - r), (0, cols - c)))


# ---------------------------------------------------------------------------
# Kernel 1: K-tiled matmul with f32 VMEM accumulator.
# Optional fused epilogue: out = 1 where (diag | acc > 0) else 0
# (== torch fill_diagonal_(1) followed by [x > 0] = 1 on the adjacency power).
# The diagonal fill only runs on diagonal output tiles (requires tm == tn).
# ---------------------------------------------------------------------------
def _matmul_kernel(a_ref, b_ref, o_ref, acc_ref, *, binarize_with_diag, tm, tn):
    # Program ids are read only at the TOP LEVEL (never inside pl.when bodies).
    i = pl.program_id(0)
    j = pl.program_id(1)
    k = pl.program_id(2)
    k_last = pl.num_programs(2) - 1
    row0 = i * tm
    col0 = j * tn
    on_diag_tile = row0 == col0          # valid because tm == tn when binarizing

    @pl.when(k == 0)
    def _():
        acc_ref[...] = jnp.zeros_like(acc_ref)

    acc_ref[...] += jnp.dot(a_ref[...], b_ref[...],
                            preferred_element_type=jnp.float32)

    if binarize_with_diag:
        @pl.when((k == k_last) & jnp.logical_not(on_diag_tile))
        def _():
            o_ref[...] = jnp.where(acc_ref[...] > 0,
                                   jnp.float32(1.0),
                                   jnp.float32(0.0)).astype(o_ref.dtype)

        @pl.when((k == k_last) & on_diag_tile)
        def _():
            acc = acc_ref[...]
            rows = row0 + jax.lax.broadcasted_iota(jnp.int32, acc.shape, 0)
            cols = col0 + jax.lax.broadcasted_iota(jnp.int32, acc.shape, 1)
            o_ref[...] = jnp.where((rows == cols) | (acc > 0),
                                   jnp.float32(1.0),
                                   jnp.float32(0.0)).astype(o_ref.dtype)
    else:
        @pl.when(k == k_last)
        def _():
            o_ref[...] = acc_ref[...].astype(o_ref.dtype)


def pallas_matmul(a, b, *, binarize_with_diag=False,
                  tm=512, tn=512, tk=512, out_dtype=jnp.float32):
    M, K = a.shape
    K2, N = b.shape
    assert K == K2
    tm = M if M < tm else tm
    tn = N if N < tn else tn
    tk = K if K < tk else tk
    assert M % tm == 0 and N % tn == 0 and K % tk == 0
    if binarize_with_diag:
        assert tm == tn, "diag-fill epilogue requires square tiles"
    grid = (M // tm, N // tn, K // tk)

    flops = 2 * M * N * K
    bytes_accessed = int(a.size * a.dtype.itemsize + b.size * b.dtype.itemsize
                         + M * N * jnp.dtype(out_dtype).itemsize)
    kernel = functools.partial(_matmul_kernel,
                               binarize_with_diag=binarize_with_diag,
                               tm=tm, tn=tn)
    return pl.pallas_call(
        kernel,
        out_shape=jax.ShapeDtypeStruct((M, N), out_dtype),
        grid_spec=pltpu.PrefetchScalarGridSpec(
            num_scalar_prefetch=0,
            grid=grid,
            in_specs=[
                pl.BlockSpec((tm, tk), lambda i, j, k: (i, k)),
                pl.BlockSpec((tk, tn), lambda i, j, k: (k, j)),
            ],
            out_specs=pl.BlockSpec((tm, tn), lambda i, j, k: (i, j)),
            scratch_shapes=[pltpu.VMEM((tm, tn), jnp.float32)],
        ),
        compiler_params=pltpu.CompilerParams(
            dimension_semantics=("parallel", "parallel", "arbitrary"),
            vmem_limit_bytes=VMEM_LIMIT),
        cost_estimate=pl.CostEstimate(flops=flops, transcendentals=0,
                                      bytes_accessed=bytes_accessed),
    )(a, b)


# ---------------------------------------------------------------------------
# Kernel 2: fused per-hop update with both branches fused into one matmul.
#
#   acc      = adj @ [wei_head | wei_tail]          (K-tiled, bf16 MXU, f32 acc)
#   per branch b at finalize:
#     fea_b    = leaky_relu(flat_b * acc_b, 0.01)       (flat_b >= 0 per row)
#     num_nei  = flat_b * deg
#     norm_b   = fea_b / (num_nei + 1e-8)
#     ln_b     = LayerNorm(norm_b)   (eps=1e-5, affine, over TRUE hidden dim)
#     agg_b    = relu((flat_b * feat + ln_b) @ w_b + b_b)    (sum Aggregator)
#     out_b    = where(flat_b > 0, agg_b, node_b)            (masked row scatter)
# ---------------------------------------------------------------------------
def _lagat_hop_kernel(wei_ref, adj_ref, node_ref, flat_ref, deg_ref, feat_ref,
                      w_ref, b_ref, gamma_ref, beta_ref, out_ref, acc_ref,
                      *, h_true, hp, tk):
    # Program ids only at the top level (interpret-safe).
    k = pl.program_id(1)
    k_last = pl.num_programs(1) - 1

    @pl.when(k == 0)
    def _():
        acc_ref[...] = jnp.zeros_like(acc_ref)

    # adj block [tm, tk] (bf16) @ resident wei slice [tk, 2*hp] (bf16) -> f32.
    wei_blk = wei_ref[pl.ds(k * tk, tk), :]
    acc_ref[...] += jnp.dot(adj_ref[...], wei_blk,
                            preferred_element_type=jnp.float32)

    @pl.when(k == k_last)
    def _():
        deg = deg_ref[...]                                 # [tm, 1]
        feat = feat_ref[...]                               # [tm, hp]
        acc = acc_ref[...]                                 # [tm, 2*hp]
        lanes = jax.lax.broadcasted_iota(jnp.int32, (feat.shape[0], hp), 1)
        valid = lanes < h_true

        def branch(b, acc_b):
            flat_b = flat_ref[b]                           # [tm, 1]
            fea = flat_b * acc_b                           # == (flat*adj) @ wei
            fea = jnp.where(fea > 0, fea, 0.01 * fea)      # LeakyReLU(0.01)
            num_nei = flat_b * deg                         # == mask_adj.sum(-1)
            norm = fea / (num_nei + 1e-8)
            # LayerNorm over the true (unpadded) hidden lanes only.
            mu = jnp.sum(jnp.where(valid, norm, 0.0),
                         axis=-1, keepdims=True) / h_true
            diff = jnp.where(valid, norm - mu, 0.0)
            var = jnp.sum(diff * diff, axis=-1, keepdims=True) / h_true
            ln = (norm - mu) * jax.lax.rsqrt(var + 1e-5)
            ln = ln * gamma_ref[b] + beta_ref[b]           # padded lanes stay 0
            combined = flat_b * feat + ln                  # sum Aggregator input
            agg = jnp.dot(combined.astype(jnp.bfloat16), w_ref[b],
                          preferred_element_type=jnp.float32)
            agg = jnp.maximum(agg + b_ref[b], 0.0)
            # masked row scatter-update (torch index assignment on nonzero rows)
            return jnp.where(flat_b > 0, agg, node_ref[b])

        out_ref[0] = branch(0, acc[:, :hp])
        out_ref[1] = branch(1, acc[:, hp:])


def lagat_hop_update(wei_cat, adj_bf16, node_stack, flat_stack, deg, feat_p,
                     w_stack, b_stack, gamma_stack, beta_stack, h_true,
                     *, tm=512, tk=512):
    n_pad, hp2 = wei_cat.shape
    hp = hp2 // 2
    tm = n_pad if n_pad < tm else tm
    tk = n_pad if n_pad < tk else tk
    assert n_pad % tm == 0 and n_pad % tk == 0
    grid = (n_pad // tm, n_pad // tk)

    flops = int(2 * n_pad * n_pad * hp2          # fused attention matmul
                + 2 * 2 * n_pad * hp * hp        # aggregator matmuls
                + 24 * n_pad * hp)               # elementwise / LN
    bytes_accessed = int(n_pad * n_pad * 2                 # adj (bf16, once)
                         + n_pad * hp2 * 2                 # resident wei (bf16)
                         + 5 * n_pad * hp * 4              # node/out/feat streams
                         + 2 * hp * hp * 2 + 6 * hp * 4)   # params
    kernel = functools.partial(_lagat_hop_kernel, h_true=h_true, hp=hp, tk=tk)

    # TODO(synk): for very large graphs (n_pad*2*hp bf16 > a few MiB) the
    # resident wei block should fall back to a K-blocked spec.
    return pl.pallas_call(
        kernel,
        out_shape=jax.ShapeDtypeStruct((2, n_pad, hp), jnp.float32),
        grid_spec=pltpu.PrefetchScalarGridSpec(
            num_scalar_prefetch=0,
            grid=grid,
            in_specs=[
                pl.BlockSpec((n_pad, hp2), lambda i, k: (0, 0)),   # wei (resident)
                pl.BlockSpec((tm, tk), lambda i, k: (i, k)),       # adjacency
                pl.BlockSpec((2, tm, hp), lambda i, k: (0, i, 0)), # current nodes
                pl.BlockSpec((2, tm, 1), lambda i, k: (0, i, 0)),  # flat masks
                pl.BlockSpec((tm, 1), lambda i, k: (i, 0)),        # degree
                pl.BlockSpec((tm, hp), lambda i, k: (i, 0)),       # base feat
                pl.BlockSpec((2, hp, hp), lambda i, k: (0, 0, 0)), # agg W (bf16)
                pl.BlockSpec((2, 1, hp), lambda i, k: (0, 0, 0)),  # agg b
                pl.BlockSpec((2, 1, hp), lambda i, k: (0, 0, 0)),  # LN gamma
                pl.BlockSpec((2, 1, hp), lambda i, k: (0, 0, 0)),  # LN beta
            ],
            out_specs=pl.BlockSpec((2, tm, hp), lambda i, k: (0, i, 0)),
            scratch_shapes=[pltpu.VMEM((tm, hp2), jnp.float32)],
        ),
        compiler_params=pltpu.CompilerParams(
            dimension_semantics=("parallel", "arbitrary"),
            vmem_limit_bytes=VMEM_LIMIT),
        cost_estimate=pl.CostEstimate(flops=flops, transcendentals=2 * n_pad,
                                      bytes_accessed=bytes_accessed),
    )(wei_cat, adj_bf16, node_stack, flat_stack, deg, feat_p,
      w_stack, b_stack, gamma_stack, beta_stack)


# ---------------------------------------------------------------------------
# Full LaGAT forward (glue in plain JAX; hot paths in the Pallas kernels).
# ---------------------------------------------------------------------------
def lagat_forward(feat_pos, idx, adj_half, head_ids, tail_ids, graph_indices,
                  embed, transform,
                  w1, b1, gamma1, beta1,
                  w2, b2, gamma2, beta2,
                  num_layers):
    n = adj_half.shape[0]
    h = transform.shape[1]

    hp = _round_up(h, LANE)
    n_pad = _round_up(n, SUBLANE) if n <= 512 else _round_up(n, 512)

    # symmetrize + binarize adjacency; zero-pad to the tiled size.
    adj = ((adj_half + adj_half.T) > 0).astype(jnp.float32)
    adj_p = _pad2d(adj, n_pad, n_pad)
    adj_bf16 = adj_p.astype(jnp.bfloat16)           # 0/1 -> lossless in bf16
    deg = jnp.sum(adj_p, axis=-1, keepdims=True)    # [n_pad, 1] f32, exact ints

    # feature transform (f32 matmul; padded rows/cols of operands are zero).
    d_in = feat_pos.shape[1] + embed.shape[1]
    d_in_pad = _round_up(d_in, LANE)
    init_feat = jnp.concatenate([feat_pos, embed[idx]], axis=1).astype(jnp.float32)
    init_feat_p = _pad2d(init_feat, n_pad, d_in_pad)
    transform_p = _pad2d(transform.astype(jnp.float32), d_in_pad, hp)
    feat_p = pallas_matmul(init_feat_p, transform_p)          # [n_pad, hp]

    # per-node head/tail queries (gather; padded rows are zero).
    all_head_ind = head_ids[graph_indices]
    all_tail_ind = tail_ids[graph_indices]
    c1_q = jnp.zeros((n_pad, hp), jnp.float32).at[:n].set(feat_p[all_head_ind])
    c2_q = jnp.zeros((n_pad, hp), jnp.float32).at[:n].set(feat_p[all_tail_ind])

    # k-hop adjacency powers; binarize + diagonal-fill fused into the matmul,
    # emitted directly as bf16 (lossless for 0/1) and fed back as the next lhs.
    eye = jnp.eye(n_pad, dtype=jnp.bfloat16)
    adj_powers = [eye]
    c1nei = [eye[head_ids]]
    c2nei = [eye[tail_ids]]
    for depth in range(num_layers - 1):
        adj_k = pallas_matmul(adj_powers[depth], adj_bf16,
                              binarize_with_diag=True, out_dtype=jnp.bfloat16)
        adj_powers.append(adj_k)
        c1nei.append(adj_k[head_ids])
        c2nei.append(adj_k[tail_ids])

    unq_head = (jnp.sum(c1nei[0].astype(jnp.float32), axis=0) > 0).astype(jnp.float32)
    unq_tail = (jnp.sum(c2nei[0].astype(jnp.float32), axis=0) > 0).astype(jnp.float32)
    init_head = unq_head[:, None] * feat_p
    init_tail = unq_tail[:, None] * feat_p

    # branch-stacked parameters, padded once (zeros in the padded lanes).
    def pad_vec(p):
        return _pad2d(p.astype(jnp.float32), p.shape[0], hp)
    w_stack = jnp.stack([_pad2d(w1.astype(jnp.float32), hp, hp),
                         _pad2d(w2.astype(jnp.float32), hp, hp)],
                        axis=0).astype(jnp.bfloat16)
    b_stack = jnp.stack([pad_vec(b1), pad_vec(b2)], axis=0)
    g_stack = jnp.stack([pad_vec(gamma1), pad_vec(gamma2)], axis=0)
    be_stack = jnp.stack([pad_vec(beta1), pad_vec(beta2)], axis=0)

    node_stack = jnp.stack([feat_p, feat_p], axis=0)     # [2, n_pad, hp]
    layer_all = [feat_p[:n, :h]]
    layer_head = [init_head[:n, :h]]
    layer_tail = [init_tail[:n, :h]]

    for hop in range(num_layers - 1, -1, -1):
        c1_flat = jnp.sum(c1nei[hop].astype(jnp.float32), axis=0)[:, None]
        c2_flat = jnp.sum(c2nei[hop].astype(jnp.float32), axis=0)[:, None]
        # TODO(synk): torch raises ValueError when hop-mask counts exceed 2;
        # that data-dependent host-side validation is not replicated here.
        flat_stack = jnp.stack([c1_flat, c2_flat], axis=0)          # [2, n_pad, 1]

        feat_head = node_stack[0]
        feat_tail = node_stack[1]
        # wei precomputed in JAX (O(N*H)); head branch uses the tail query.
        wei_h = jnp.abs(jnp.sum(c2_q * feat_head, -1, keepdims=True)) * feat_head
        wei_t = jnp.abs(jnp.sum(c1_q * feat_tail, -1, keepdims=True)) * feat_tail
        wei_cat = jnp.concatenate([wei_h, wei_t], axis=-1).astype(jnp.bfloat16)

        node_stack = lagat_hop_update(wei_cat, adj_bf16, node_stack, flat_stack,
                                      deg, feat_p, w_stack, b_stack,
                                      g_stack, be_stack, h)
        layer_all.append((node_stack[0] + node_stack[1])[:n, :h])
        layer_head.append(node_stack[0][:n, :h])
        layer_tail.append(node_stack[1][:n, :h])

    h_all = jnp.stack(layer_all, axis=1)     # [N, num_layers + 1, H]
    h1 = jnp.stack(layer_head, axis=1)
    h2 = jnp.stack(layer_tail, axis=1)
    return h_all, h1, h2


# ---------------------------------------------------------------------------
# Pure-JAX reference (mirrors the torch module) for a correctness check.
# ---------------------------------------------------------------------------
def reference_forward(feat_pos, idx, adj_half, head_ids, tail_ids, graph_indices,
                      embed, transform,
                      w1, b1, gamma1, beta1,
                      w2, b2, gamma2, beta2, num_layers):
    n = adj_half.shape[0]
    adj = ((adj_half + adj_half.T) > 0).astype(jnp.float32)
    feat = jnp.concatenate([feat_pos, embed[idx]], axis=1) @ transform
    c1q = feat[head_ids[graph_indices]]
    c2q = feat[tail_ids[graph_indices]]
    eye = jnp.eye(n, dtype=jnp.float32)
    powers, c1nei, c2nei = [eye], [eye[head_ids]], [eye[tail_ids]]
    diag = jnp.arange(n)
    for d in range(num_layers - 1):
        ak = powers[d] @ adj
        ak = ak.at[diag, diag].set(1.0)
        ak = (ak > 0).astype(jnp.float32)
        powers.append(ak); c1nei.append(ak[head_ids]); c2nei.append(ak[tail_ids])
    unq_h = (c1nei[0].sum(0) > 0).astype(jnp.float32)
    unq_t = (c2nei[0].sum(0) > 0).astype(jnp.float32)

    def att(q, node, mask_adj, gamma, beta):
        cor = jnp.abs(jnp.sum(q * node, -1, keepdims=True))
        wei = cor * node
        nn = mask_adj.sum(-1, keepdims=True)
        fu = mask_adj @ wei
        fu = jnp.where(fu > 0, fu, 0.01 * fu)
        nm = fu / (nn + 1e-8)
        mu = nm.mean(-1, keepdims=True)
        var = ((nm - mu) ** 2).mean(-1, keepdims=True)
        return (nm - mu) * jax.lax.rsqrt(var + 1e-5) * gamma + beta

    fh, ft = feat, feat
    la, lh, lt = [feat], [unq_h[:, None] * feat], [unq_t[:, None] * feat]
    for hop in range(num_layers - 1, -1, -1):
        f1 = c1nei[hop].sum(0)[:, None]
        f2 = c2nei[hop].sum(0)[:, None]
        up1 = att(c2q, fh, f1 * adj, gamma1, beta1)
        up2 = att(c1q, ft, f2 * adj, gamma2, beta2)
        agg1 = jnp.maximum((f1 * feat + up1) @ w1 + b1, 0.0)
        agg2 = jnp.maximum((f2 * feat + up2) @ w2 + b2, 0.0)
        fh = jnp.where(f1 > 0, agg1, fh)
        ft = jnp.where(f2 > 0, agg2, ft)
        la.append(fh + ft); lh.append(fh); lt.append(ft)
    return jnp.stack(la, 1), jnp.stack(lh, 1), jnp.stack(lt, 1)


# ---------------------------------------------------------------------------
# Deterministic synthetic setup + run.
# ---------------------------------------------------------------------------
if __name__ == "__main__":
    key = jax.random.PRNGKey(0)
    ks = jax.random.split(key, 8)

    B = 2                     # batched graphs
    NODES_PER_G = 8
    N = B * NODES_PER_G       # 16 nodes total
    INIT_EMB = 16             # params.init_emb_dim
    POS_DIM = 8               # params.inp_dim
    HID = 32                  # params.hidden_dim
    NUM_LAYERS = 2            # params.num_gcn_layers
    NUM_KG_NODES = 64         # params.num_nodes

    head_ids = jnp.asarray(np.array([0, 8], dtype=np.int32))
    tail_ids = jnp.asarray(np.array([1, 9], dtype=np.int32))
    graph_indices = jnp.asarray(
        np.repeat(np.arange(B), NODES_PER_G).astype(np.int32))

    block_mask = np.zeros((N, N), np.float32)
    for g in range(B):
        s = g * NODES_PER_G
        block_mask[s:s + NODES_PER_G, s:s + NODES_PER_G] = 1.0
    adj_half = (jax.random.bernoulli(ks[0], 0.35, (N, N)).astype(jnp.float32)
                * jnp.asarray(block_mask))

    feat_pos = jax.random.normal(ks[1], (N, POS_DIM), jnp.float32)
    idx = jax.random.randint(ks[2], (N,), 0, NUM_KG_NODES, jnp.int32)

    def xavier_uniform(k, shape, gain):
        a = gain * np.sqrt(6.0 / (shape[0] + shape[1]))
        return jax.random.uniform(k, shape, jnp.float32, -a, a)

    gain = float(np.sqrt(2.0))
    embed = xavier_uniform(ks[3], (NUM_KG_NODES, INIT_EMB), gain)
    transform = xavier_uniform(ks[4], (INIT_EMB + POS_DIM, HID), gain)

    w1 = 0.01 * jax.random.normal(ks[5], (HID, HID), jnp.float32)
    w2 = 0.01 * jax.random.normal(ks[6], (HID, HID), jnp.float32)
    b1 = jnp.zeros((1, HID), jnp.float32)
    b2 = jnp.zeros((1, HID), jnp.float32)
    gamma1 = jnp.ones((1, HID), jnp.float32)
    beta1 = jnp.zeros((1, HID), jnp.float32)
    gamma2 = jnp.ones((1, HID), jnp.float32)
    beta2 = jnp.zeros((1, HID), jnp.float32)

    fwd = jax.jit(lagat_forward, static_argnums=16)
    h_all, h1, h2 = fwd(
        feat_pos, idx, adj_half, head_ids, tail_ids, graph_indices,
        embed, transform,
        w1, b1, gamma1, beta1,
        w2, b2, gamma2, beta2,
        NUM_LAYERS)
    jax.block_until_ready(h_all)

    assert h_all.shape == (N, NUM_LAYERS + 1, HID)
    assert h1.shape == (N, NUM_LAYERS + 1, HID)
    assert h2.shape == (N, NUM_LAYERS + 1, HID)
    assert bool(jnp.all(jnp.isfinite(h_all)))

    r_all, r1, r2 = reference_forward(
        feat_pos, idx, adj_half, head_ids, tail_ids, graph_indices,
        embed, transform,
        w1, b1, gamma1, beta1,
        w2, b2, gamma2, beta2, NUM_LAYERS)
    np.testing.assert_allclose(np.asarray(h_all), np.asarray(r_all),
                               rtol=5e-2, atol=5e-2)
    np.testing.assert_allclose(np.asarray(h1), np.asarray(r1),
                               rtol=5e-2, atol=5e-2)
    np.testing.assert_allclose(np.asarray(h2), np.asarray(r2),
                               rtol=5e-2, atol=5e-2)

    print("KERNEL_OK")
</pallas_src>

<mosaic_0001>
module attributes {stable_mosaic.version = 11 : i64} {
  func.func @_matmul_kernel(%arg0: i32, %arg1: i32, %arg2: i32, %arg3: memref<16x16xbf16, #tpu.memory_space<vmem>>, %arg4: memref<16x16xbf16, #tpu.memory_space<vmem>>, %arg5: memref<16x16xbf16, #tpu.memory_space<vmem>>, %arg6: memref<16x16xf32, #tpu.memory_space<vmem>>) attributes {dimension_semantics = [#tpu.dimension_semantics<parallel>, #tpu.dimension_semantics<parallel>, #tpu.dimension_semantics<arbitrary>], iteration_bounds = array<i64: 1, 1, 1>, scalar_prefetch = 0 : i64, scratch_operands = 1 : i64, tpu.core_type = #tpu.core_type<tc>, window_params = [{transform_indices = @transform_0, window_bounds = array<i64: 16, 16>}, {transform_indices = @transform_1, window_bounds = array<i64: 16, 16>}, {transform_indices = @transform_2, window_bounds = array<i64: 16, 16>}]} {
    %c16_i32 = arith.constant 16 : i32
    %0 = arith.muli %arg0, %c16_i32 : i32
    %c16_i32_0 = arith.constant 16 : i32
    %1 = arith.muli %arg1, %c16_i32_0 : i32
    %2 = arith.cmpi eq, %0, %1 : i32
    %c0_i32 = arith.constant 0 : i32
    %3 = arith.cmpi eq, %arg2, %c0_i32 : i32
    %4 = arith.extui %3 : i1 to i32
    %c0_i32_1 = arith.constant 0 : i32
    %5 = arith.cmpi ne, %4, %c0_i32_1 : i32
    scf.if %5 {
      %cst_13 = arith.constant 0.000000e+00 : f32
      %21 = vector.broadcast %cst_13 : f32 to vector<16x16xf32>
      %c0_14 = arith.constant 0 : index
      %c0_15 = arith.constant 0 : index
      %22 = vector.load %arg6[%c0_14, %c0_15] : memref<16x16xf32, #tpu.memory_space<vmem>>, vector<16x16xf32>
      tpu.vector_store %arg6[%c0_14, %c0_15], %21 {strides = array<i32>} : memref<16x16xf32, #tpu.memory_space<vmem>>, vector<16x16xf32>,
    } else {
    }
    %c0 = arith.constant 0 : index
    %c0_2 = arith.constant 0 : index
    %6 = vector.load %arg6[%c0, %c0_2] : memref<16x16xf32, #tpu.memory_space<vmem>>, vector<16x16xf32>
    %c0_3 = arith.constant 0 : index
    %c0_4 = arith.constant 0 : index
    %7 = vector.load %arg3[%c0_3, %c0_4] : memref<16x16xbf16, #tpu.memory_space<vmem>>, vector<16x16xbf16>
    %c0_5 = arith.constant 0 : index
    %c0_6 = arith.constant 0 : index
    %8 = vector.load %arg4[%c0_5, %c0_6] : memref<16x16xbf16, #tpu.memory_space<vmem>>, vector<16x16xbf16>
    %cst = arith.constant dense<0.000000e+00> : vector<16x16xf32>
    %9 = tpu.matmul %7, %8, %cst {dimension_numbers = #tpu.dot_dimension_numbers<[1], [0], [0], [1], [0, 0, 1, 1], [], []>} : vector<16x16xbf16>, vector<16x16xbf16>, vector<16x16xf32> -> vector<16x16xf32>
    %10 = arith.addf %6, %9 : vector<16x16xf32>
    %c0_7 = arith.constant 0 : index
    %c0_8 = arith.constant 0 : index
    %11 = vector.load %arg6[%c0_7, %c0_8] : memref<16x16xf32, #tpu.memory_space<vmem>>, vector<16x16xf32>
    tpu.vector_store %arg6[%c0_7, %c0_8], %10 {strides = array<i32>} : memref<16x16xf32, #tpu.memory_space<vmem>>, vector<16x16xf32>,
    %c0_i32_9 = arith.constant 0 : i32
    %12 = arith.cmpi eq, %arg2, %c0_i32_9 : i32
    %true = arith.constant true
    %13 = arith.xori %2, %true : i1
    %14 = arith.andi %12, %13 : i1
    %15 = arith.extui %14 : i1 to i32
    %c0_i32_10 = arith.constant 0 : i32
    %16 = arith.cmpi ne, %15, %c0_i32_10 : i32
    scf.if %16 {
      %c0_13 = arith.constant 0 : index
      %c0_14 = arith.constant 0 : index
      %21 = vector.load %arg6[%c0_13, %c0_14] : memref<16x16xf32, #tpu.memory_space<vmem>>, vector<16x16xf32>
      %cst_15 = arith.constant 0.000000e+00 : f32
      %22 = vector.broadcast %cst_15 : f32 to vector<16x16xf32>
      %23 = arith.cmpf ogt, %21, %22 : vector<16x16xf32>
      %cst_16 = arith.constant 1.000000e+00 : f32
      %cst_17 = arith.constant 0.000000e+00 : f32
      %24 = vector.broadcast %cst_16 : f32 to vector<16x16xf32>
      %25 = vector.broadcast %cst_17 : f32 to vector<16x16xf32>
      %26 = arith.select %23, %24, %25 : vector<16x16xi1>, vector<16x16xf32>
      %27 = arith.truncf %26 : vector<16x16xf32> to vector<16x16xbf16>
      %c0_18 = arith.constant 0 : index
      %c0_19 = arith.constant 0 : index
      %28 = vector.load %arg5[%c0_18, %c0_19] : memref<16x16xbf16, #tpu.memory_space<vmem>>, vector<16x16xbf16>
      tpu.vector_store %arg5[%c0_18, %c0_19], %27 {strides = array<i32>} : memref<16x16xbf16, #tpu.memory_space<vmem>>, vector<16x16xbf16>,
    } else {
    }
    %c0_i32_11 = arith.constant 0 : i32
    %17 = arith.cmpi eq, %arg2, %c0_i32_11 : i32
    %18 = arith.andi %17, %2 : i1
    %19 = arith.extui %18 : i1 to i32
    %c0_i32_12 = arith.constant 0 : i32
    %20 = arith.cmpi ne, %19, %c0_i32_12 : i32
    scf.if %20 {
      %c0_13 = arith.constant 0 : index
      %c0_14 = arith.constant 0 : index
      %21 = vector.load %arg6[%c0_13, %c0_14] : memref<16x16xf32, #tpu.memory_space<vmem>>, vector<16x16xf32>
      %22 = tpu.iota {dimensions = array<i32: 0>} : vector<16x16xi32>
      %23 = vector.broadcast %0 : i32 to vector<16x16xi32>
      %24 = arith.addi %23, %22 : vector<16x16xi32>
      %25 = tpu.iota {dimensions = array<i32: 1>} : vector<16x16xi32>
      %26 = vector.broadcast %1 : i32 to vector<16x16xi32>
      %27 = arith.addi %26, %25 : vector<16x16xi32>
      %28 = arith.cmpi eq, %24, %27 : vector<16x16xi32>
      %cst_15 = arith.constant 0.000000e+00 : f32
      %29 = vector.broadcast %cst_15 : f32 to vector<16x16xf32>
      %30 = arith.cmpf ogt, %21, %29 : vector<16x16xf32>
      %31 = arith.ori %28, %30 : vector<16x16xi1>
      %cst_16 = arith.constant 1.000000e+00 : f32
      %cst_17 = arith.constant 0.000000e+00 : f32
      %32 = vector.broadcast %cst_16 : f32 to vector<16x16xf32>
      %33 = vector.broadcast %cst_17 : f32 to vector<16x16xf32>
      %34 = arith.select %31, %32, %33 : vector<16x16xi1>, vector<16x16xf32>
      %35 = arith.truncf %34 : vector<16x16xf32> to vector<16x16xbf16>
      %c0_18 = arith.constant 0 : index
      %c0_19 = arith.constant 0 : index
      %36 = vector.load %arg5[%c0_18, %c0_19] : memref<16x16xbf16, #tpu.memory_space<vmem>>, vector<16x16xbf16>
      tpu.vector_store %arg5[%c0_18, %c0_19], %35 {strides = array<i32>} : memref<16x16xbf16, #tpu.memory_space<vmem>>, vector<16x16xbf16>,
    } else {
    }
    return
  }
  func.func @transform_0(%arg0: i32, %arg1: i32, %arg2: i32) -> (i32, i32) {
    %c0_i32 = arith.constant 0 : i32
    return %arg0, %arg2 : i32, i32
  }
  func.func @transform_1(%arg0: i32, %arg1: i32, %arg2: i32) -> (i32, i32) {
    %c0_i32 = arith.constant 0 : i32
    return %arg2, %arg1 : i32, i32
  }
  func.func @transform_2(%arg0: i32, %arg1: i32, %arg2: i32) -> (i32, i32) {
    %c0_i32 = arith.constant 0 : i32
    return %arg0, %arg1 : i32, i32
  }
}

module attributes {stable_mosaic.version = 11 : i64} {
  func.func @_matmul_kernel(%arg0: i32, %arg1: i32, %arg2: i32, %arg3: memref<16x128xf32, #tpu.memory_space<vmem>>, %arg4: memref<128x128xf32, #tpu.memory_space<vmem>>, %arg5: memref<16x128xf32, #tpu.memory_space<vmem>>, %arg6: memref<16x128xf32, #tpu.memory_space<vmem>>) attributes {dimension_semantics = [#tpu.dimension_semantics<parallel>, #tpu.dimension_semantics<parallel>, #tpu.dimension_semantics<arbitrary>], iteration_bounds = array<i64: 1, 1, 1>, scalar_prefetch = 0 : i64, scratch_operands = 1 : i64, tpu.core_type = #tpu.core_type<tc>, window_params = [{transform_indices = @transform_0, window_bounds = array<i64: 16, 128>}, {transform_indices = @transform_1, window_bounds = array<i64: 128, 128>}, {transform_indices = @transform_2, window_bounds = array<i64: 16, 128>}]} {
    %c0_i32 = arith.constant 0 : i32
    %0 = arith.cmpi eq, %arg2, %c0_i32 : i32
    %1 = arith.extui %0 : i1 to i32
    %c0_i32_0 = arith.constant 0 : i32
    %2 = arith.cmpi ne, %1, %c0_i32_0 : i32
    scf.if %2 {
      %cst_10 = arith.constant 0.000000e+00 : f32
      %12 = vector.broadcast %cst_10 : f32 to vector<16x128xf32>
      %c0_11 = arith.constant 0 : index
      %c0_12 = arith.constant 0 : index
      %13 = vector.load %arg6[%c0_11, %c0_12] : memref<16x128xf32, #tpu.memory_space<vmem>>, vector<16x128xf32>
      tpu.vector_store %arg6[%c0_11, %c0_12], %12 {strides = array<i32>} : memref<16x128xf32, #tpu.memory_space<vmem>>, vector<16x128xf32>,
    } else {
    }
    %c0 = arith.constant 0 : index
    %c0_1 = arith.constant 0 : index
    %3 = vector.load %arg6[%c0, %c0_1] : memref<16x128xf32, #tpu.memory_space<vmem>>, vector<16x128xf32>
    %c0_2 = arith.constant 0 : index
    %c0_3 = arith.constant 0 : index
    %4 = vector.load %arg3[%c0_2, %c0_3] : memref<16x128xf32, #tpu.memory_space<vmem>>, vector<16x128xf32>
    %c0_4 = arith.constant 0 : index
    %c0_5 = arith.constant 0 : index
    %5 = vector.load %arg4[%c0_4, %c0_5] : memref<128x128xf32, #tpu.memory_space<vmem>>, vector<128x128xf32>
    %cst = arith.constant dense<0.000000e+00> : vector<16x128xf32>
    %6 = tpu.matmul %4, %5, %cst {dimension_numbers = #tpu.dot_dimension_numbers<[1], [0], [0], [1], [0, 0, 1, 1], [], []>} : vector<16x128xf32>, vector<128x128xf32>, vector<16x128xf32> -> vector<16x128xf32>
    %7 = arith.addf %3, %6 : vector<16x128xf32>
    %c0_6 = arith.constant 0 : index
    %c0_7 = arith.constant 0 : index
    %8 = vector.load %arg6[%c0_6, %c0_7] : memref<16x128xf32, #tpu.memory_space<vmem>>, vector<16x128xf32>
    tpu.vector_store %arg6[%c0_6, %c0_7], %7 {strides = array<i32>} : memref<16x128xf32, #tpu.memory_space<vmem>>, vector<16x128xf32>,
    %c0_i32_8 = arith.constant 0 : i32
    %9 = arith.cmpi eq, %arg2, %c0_i32_8 : i32
    %10 = arith.extui %9 : i1 to i32
    %c0_i32_9 = arith.constant 0 : i32
    %11 = arith.cmpi ne, %10, %c0_i32_9 : i32
    scf.if %11 {
      %c0_10 = arith.constant 0 : index
      %c0_11 = arith.constant 0 : index
      %12 = vector.load %arg6[%c0_10, %c0_11] : memref<16x128xf32, #tpu.memory_space<vmem>>, vector<16x128xf32>
      %c0_12 = arith.constant 0 : index
      %c0_13 = arith.constant 0 : index
      %13 = vector.load %arg5[%c0_12, %c0_13] : memref<16x128xf32, #tpu.memory_space<vmem>>, vector<16x128xf32>
      tpu.vector_store %arg5[%c0_12, %c0_13], %12 {strides = array<i32>} : memref<16x128xf32, #tpu.memory_space<vmem>>, vector<16x128xf32>,
    } else {
    }
    return
  }
  func.func @transform_0(%arg0: i32, %arg1: i32, %arg2: i32) -> (i32, i32) {
    %c0_i32 = arith.constant 0 : i32
    return %arg0, %arg2 : i32, i32
  }
  func.func @transform_1(%arg0: i32, %arg1: i32, %arg2: i32) -> (i32, i32) {
    %c0_i32 = arith.constant 0 : i32
    return %arg2, %arg1 : i32, i32
  }
  func.func @transform_2(%arg0: i32, %arg1: i32, %arg2: i32) -> (i32, i32) {
    %c0_i32 = arith.constant 0 : i32
    return %arg0, %arg1 : i32, i32
  }
}

module attributes {stable_mosaic.version = 11 : i64} {
  func.func @_lagat_hop_kernel(%arg0: i32, %arg1: i32, %arg2: memref<16x256xbf16, #tpu.memory_space<vmem>>, %arg3: memref<16x16xbf16, #tpu.memory_space<vmem>>, %arg4: memref<2x16x128xf32, #tpu.memory_space<vmem>>, %arg5: memref<2x16x1xf32, #tpu.memory_space<vmem>>, %arg6: memref<16x1xf32, #tpu.memory_space<vmem>>, %arg7: memref<16x128xf32, #tpu.memory_space<vmem>>, %arg8: memref<2x128x128xbf16, #tpu.memory_space<vmem>>, %arg9: memref<2x1x128xf32, #tpu.memory_space<vmem>>, %arg10: memref<2x1x128xf32, #tpu.memory_space<vmem>>, %arg11: memref<2x1x128xf32, #tpu.memory_space<vmem>>, %arg12: memref<2x16x128xf32, #tpu.memory_space<vmem>>, %arg13: memref<16x256xf32, #tpu.memory_space<vmem>>) attributes {dimension_semantics = [#tpu.dimension_semantics<parallel>, #tpu.dimension_semantics<arbitrary>], iteration_bounds = array<i64: 1, 1>, scalar_prefetch = 0 : i64, scratch_operands = 1 : i64, tpu.core_type = #tpu.core_type<tc>, window_params = [{pipeline_mode = #tpu.pipeline_mode<synchronous>, transform_indices = @transform_0, window_bounds = array<i64: 16, 256>}, {transform_indices = @transform_1, window_bounds = array<i64: 16, 16>}, {transform_indices = @transform_2, window_bounds = array<i64: 2, 16, 128>}, {transform_indices = @transform_3, window_bounds = array<i64: 2, 16, 1>}, {transform_indices = @transform_4, window_bounds = array<i64: 16, 1>}, {transform_indices = @transform_5, window_bounds = array<i64: 16, 128>}, {pipeline_mode = #tpu.pipeline_mode<synchronous>, transform_indices = @transform_6, window_bounds = array<i64: 2, 128, 128>}, {pipeline_mode = #tpu.pipeline_mode<synchronous>, transform_indices = @transform_7, window_bounds = array<i64: 2, 1, 128>}, {pipeline_mode = #tpu.pipeline_mode<synchronous>, transform_indices = @transform_8, window_bounds = array<i64: 2, 1, 128>}, {pipeline_mode = #tpu.pipeline_mode<synchronous>, transform_indices = @transform_9, window_bounds = array<i64: 2, 1, 128>}, {transform_indices = @transform_10, window_bounds = array<i64: 2, 16, 128>}]} {
    %c0_i32 = arith.constant 0 : i32
    %0 = arith.cmpi eq, %arg1, %c0_i32 : i32
    %1 = arith.extui %0 : i1 to i32
    %c0_i32_0 = arith.constant 0 : i32
    %2 = arith.cmpi ne, %1, %c0_i32_0 : i32
    scf.if %2 {
      %cst_9 = arith.constant 0.000000e+00 : f32
      %14 = vector.broadcast %cst_9 : f32 to vector<16x256xf32>
      %c0_10 = arith.constant 0 : index
      %c0_11 = arith.constant 0 : index
      %15 = vector.load %arg13[%c0_10, %c0_11] : memref<16x256xf32, #tpu.memory_space<vmem>>, vector<16x256xf32>
      tpu.vector_store %arg13[%c0_10, %c0_11], %14 {strides = array<i32>} : memref<16x256xf32, #tpu.memory_space<vmem>>, vector<16x256xf32>,
    } else {
    }
    %c16_i32 = arith.constant 16 : i32
    %3 = arith.muli %arg1, %c16_i32 : i32
    %4 = arith.index_cast %3 : i32 to index
    %c0 = arith.constant 0 : index
    %5 = vector.load %arg2[%4, %c0] : memref<16x256xbf16, #tpu.memory_space<vmem>>, vector<16x256xbf16>
    %c0_1 = arith.constant 0 : index
    %c0_2 = arith.constant 0 : index
    %6 = vector.load %arg13[%c0_1, %c0_2] : memref<16x256xf32, #tpu.memory_space<vmem>>, vector<16x256xf32>
    %c0_3 = arith.constant 0 : index
    %c0_4 = arith.constant 0 : index
    %7 = vector.load %arg3[%c0_3, %c0_4] : memref<16x16xbf16, #tpu.memory_space<vmem>>, vector<16x16xbf16>
    %cst = arith.constant dense<0.000000e+00> : vector<16x256xf32>
    %8 = tpu.matmul %7, %5, %cst {dimension_numbers = #tpu.dot_dimension_numbers<[1], [0], [0], [1], [0, 0, 1, 1], [], []>} : vector<16x16xbf16>, vector<16x256xbf16>, vector<16x256xf32> -> vector<16x256xf32>
    %9 = arith.addf %6, %8 : vector<16x256xf32>
    %c0_5 = arith.constant 0 : index
    %c0_6 = arith.constant 0 : index
    %10 = vector.load %arg13[%c0_5, %c0_6] : memref<16x256xf32, #tpu.memory_space<vmem>>, vector<16x256xf32>
    tpu.vector_store %arg13[%c0_5, %c0_6], %9 {strides = array<i32>} : memref<16x256xf32, #tpu.memory_space<vmem>>, vector<16x256xf32>,
    %c0_i32_7 = arith.constant 0 : i32
    %11 = arith.cmpi eq, %arg1, %c0_i32_7 : i32
    %12 = arith.extui %11 : i1 to i32
    %c0_i32_8 = arith.constant 0 : i32
    %13 = arith.cmpi ne, %12, %c0_i32_8 : i32
    scf.if %13 {
      %c0_9 = arith.constant 0 : index
      %c0_10 = arith.constant 0 : index
      %14 = vector.load %arg6[%c0_9, %c0_10] : memref<16x1xf32, #tpu.memory_space<vmem>>, vector<16x1xf32>
      %c0_11 = arith.constant 0 : index
      %c0_12 = arith.constant 0 : index
      %15 = vector.load %arg7[%c0_11, %c0_12] : memref<16x128xf32, #tpu.memory_space<vmem>>, vector<16x128xf32>
      %c0_13 = arith.constant 0 : index
      %c0_14 = arith.constant 0 : index
      %16 = vector.load %arg13[%c0_13, %c0_14] : memref<16x256xf32, #tpu.memory_space<vmem>>, vector<16x256xf32>
      %17 = tpu.iota {dimensions = array<i32: 1>} : vector<16x128xi32>
      %c32_i32 = arith.constant 32 : i32
      %18 = vector.broadcast %c32_i32 : i32 to vector<16x128xi32>
      %19 = arith.cmpi slt, %17, %18 : vector<16x128xi32>
      %20 = vector.extract_strided_slice %16 {offsets = [0, 0], sizes = [16, 128], strides = [1, 1]} : vector<16x256xf32> to vector<16x128xf32>
      %c0_15 = arith.constant 0 : index
      %c0_16 = arith.constant 0 : index
      %c0_17 = arith.constant 0 : index
      %21 = vector.load %arg5[%c0_15, %c0_16, %c0_17] : memref<2x16x1xf32, #tpu.memory_space<vmem>>, vector<1x16x1xf32>
      %22 = vector.shape_cast %21 : vector<1x16x1xf32> to vector<16x1xf32>
      %23 = vector.broadcast %22 : vector<16x1xf32> to vector<16x128xf32>
      %24 = arith.mulf %23, %20 : vector<16x128xf32>
      %cst_18 = arith.constant 0.000000e+00 : f32
      %25 = vector.broadcast %cst_18 : f32 to vector<16x128xf32>
      %26 = arith.cmpf ogt, %24, %25 : vector<16x128xf32>
      %cst_19 = arith.constant 0.00999999977 : f32
      %27 = vector.broadcast %cst_19 : f32 to vector<16x128xf32>
      %28 = arith.mulf %27, %24 : vector<16x128xf32>
      %29 = arith.select %26, %24, %28 : vector<16x128xi1>, vector<16x128xf32>
      %30 = arith.mulf %22, %14 : vector<16x1xf32>
      %cst_20 = arith.constant 9.99999993E-9 : f32
      %31 = vector.broadcast %cst_20 : f32 to vector<16x1xf32>
      %32 = arith.addf %30, %31 : vector<16x1xf32>
      %33 = vector.broadcast %32 : vector<16x1xf32> to vector<16x128xf32>
      %34 = arith.divf %29, %33 : vector<16x128xf32>
      %cst_21 = arith.constant 0.000000e+00 : f32
      %35 = vector.broadcast %cst_21 : f32 to vector<16x128xf32>
      %36 = arith.select %19, %34, %35 : vector<16x128xi1>, vector<16x128xf32>
      %cst_22 = arith.constant dense<0.000000e+00> : vector<16xf32>
      %37 = vector.multi_reduction <add>, %36, %cst_22 [1] : vector<16x128xf32> to vector<16xf32>
      %38 = vector.shape_cast %37 : vector<16xf32> to vector<16x1xf32>
      %cst_23 = arith.constant 3.200000e+01 : f32
      %39 = vector.broadcast %cst_23 : f32 to vector<16x1xf32>
      %40 = arith.divf %38, %39 : vector<16x1xf32>
      %41 = vector.broadcast %40 : vector<16x1xf32> to vector<16x128xf32>
      %42 = arith.subf %34, %41 : vector<16x128xf32>
      %cst_24 = arith.constant 0.000000e+00 : f32
      %43 = vector.broadcast %cst_24 : f32 to vector<16x128xf32>
      %44 = arith.select %19, %42, %43 : vector<16x128xi1>, vector<16x128xf32>
      %45 = arith.mulf %44, %44 : vector<16x128xf32>
      %cst_25 = arith.constant dense<0.000000e+00> : vector<16xf32>
      %46 = vector.multi_reduction <add>, %45, %cst_25 [1] : vector<16x128xf32> to vector<16xf32>
      %47 = vector.shape_cast %46 : vector<16xf32> to vector<16x1xf32>
      %cst_26 = arith.constant 3.200000e+01 : f32
      %48 = vector.broadcast %cst_26 : f32 to vector<16x1xf32>
      %49 = arith.divf %47, %48 : vector<16x1xf32>
      %50 = vector.broadcast %40 : vector<16x1xf32> to vector<16x128xf32>
      %51 = arith.subf %34, %50 : vector<16x128xf32>
      %cst_27 = arith.constant 9.99999974E-6 : f32
      %52 = vector.broadcast %cst_27 : f32 to vector<16x1xf32>
      %53 = arith.addf %49, %52 : vector<16x1xf32>
      %54 = math.rsqrt %53 : vector<16x1xf32>
      %55 = vector.broadcast %54 : vector<16x1xf32> to vector<16x128xf32>
      %56 = arith.mulf %51, %55 : vector<16x128xf32>
      %c0_28 = arith.constant 0 : index
      %c0_29 = arith.constant 0 : index
      %c0_30 = arith.constant 0 : index
      %57 = vector.load %arg10[%c0_28, %c0_29, %c0_30] : memref<2x1x128xf32, #tpu.memory_space<vmem>>, vector<1x1x128xf32>
      %58 = vector.shape_cast %57 : vector<1x1x128xf32> to vector<1x128xf32>
      %59 = vector.broadcast %58 : vector<1x128xf32> to vector<16x128xf32>
      %60 = arith.mulf %56, %59 : vector<16x128xf32>
      %c0_31 = arith.constant 0 : index
      %c0_32 = arith.constant 0 : index
      %c0_33 = arith.constant 0 : index
      %61 = vector.load %arg11[%c0_31, %c0_32, %c0_33] : memref<2x1x128xf32, #tpu.memory_space<vmem>>, vector<1x1x128xf32>
      %62 = vector.shape_cast %61 : vector<1x1x128xf32> to vector<1x128xf32>
      %63 = vector.broadcast %62 : vector<1x128xf32> to vector<16x128xf32>
      %64 = arith.addf %60, %63 : vector<16x128xf32>
      %65 = vector.broadcast %22 : vector<16x1xf32> to vector<16x128xf32>
      %66 = arith.mulf %65, %15 : vector<16x128xf32>
      %67 = arith.addf %66, %64 : vector<16x128xf32>
      %68 = arith.truncf %67 : vector<16x128xf32> to vector<16x128xbf16>
      %c0_34 = arith.constant 0 : index
      %c0_35 = arith.constant 0 : index
      %c0_36 = arith.constant 0 : index
      %69 = vector.load %arg8[%c0_34, %c0_35, %c0_36] : memref<2x128x128xbf16, #tpu.memory_space<vmem>>, vector<1x128x128xbf16>
      %70 = vector.shape_cast %69 : vector<1x128x128xbf16> to vector<128x128xbf16>
      %cst_37 = arith.constant dense<0.000000e+00> : vector<16x128xf32>
      %71 = tpu.matmul %68, %70, %cst_37 {dimension_numbers = #tpu.dot_dimension_numbers<[1], [0], [0], [1], [0, 0, 1, 1], [], []>} : vector<16x128xbf16>, vector<128x128xbf16>, vector<16x128xf32> -> vector<16x128xf32>
      %c0_38 = arith.constant 0 : index
      %c0_39 = arith.constant 0 : index
      %c0_40 = arith.constant 0 : index
      %72 = vector.load %arg9[%c0_38, %c0_39, %c0_40] : memref<2x1x128xf32, #tpu.memory_space<vmem>>, vector<1x1x128xf32>
      %73 = vector.shape_cast %72 : vector<1x1x128xf32> to vector<1x128xf32>
      %74 = vector.broadcast %73 : vector<1x128xf32> to vector<16x128xf32>
      %75 = arith.addf %71, %74 : vector<16x128xf32>
      %cst_41 = arith.constant 0.000000e+00 : f32
      %76 = vector.broadcast %cst_41 : f32 to vector<16x128xf32>
      %77 = arith.maximumf %75, %76 : vector<16x128xf32>
      %cst_42 = arith.constant 0.000000e+00 : f32
      %78 = vector.broadcast %cst_42 : f32 to vector<16x1xf32>
      %79 = arith.cmpf ogt, %22, %78 : vector<16x1xf32>
      %c0_43 = arith.constant 0 : index
      %c0_44 = arith.constant 0 : index
      %c0_45 = arith.constant 0 : index
      %80 = vector.load %arg4[%c0_43, %c0_44, %c0_45] : memref<2x16x128xf32, #tpu.memory_space<vmem>>, vector<1x16x128xf32>
      %81 = vector.shape_cast %80 : vector<1x16x128xf32> to vector<16x128xf32>
      %82 = vector.shape_cast %79 : vector<16x1xi1> to vector<16x1xi1>
      %83 = vector.broadcast %82 : vector<16x1xi1> to vector<16x128xi1>
      %84 = arith.select %83, %77, %81 : vector<16x128xi1>, vector<16x128xf32>
      %c0_46 = arith.constant 0 : index
      %c0_47 = arith.constant 0 : index
      %c0_48 = arith.constant 0 : index
      %85 = vector.load %arg12[%c0_46, %c0_47, %c0_48] : memref<2x16x128xf32, #tpu.memory_space<vmem>>, vector<1x16x128xf32>
      %86 = vector.shape_cast %85 : vector<1x16x128xf32> to vector<16x128xf32>
      %87 = vector.shape_cast %84 : vector<16x128xf32> to vector<1x16x128xf32>
      tpu.vector_store %arg12[%c0_46, %c0_47, %c0_48], %87 {strides = array<i32>} : memref<2x16x128xf32, #tpu.memory_space<vmem>>, vector<1x16x128xf32>,
      %88 = vector.extract_strided_slice %16 {offsets = [0, 128], sizes = [16, 128], strides = [1, 1]} : vector<16x256xf32> to vector<16x128xf32>
      %c1 = arith.constant 1 : index
      %c0_49 = arith.constant 0 : index
      %c0_50 = arith.constant 0 : index
      %89 = vector.load %arg5[%c1, %c0_49, %c0_50] : memref<2x16x1xf32, #tpu.memory_space<vmem>>, vector<1x16x1xf32>
      %90 = vector.shape_cast %89 : vector<1x16x1xf32> to vector<16x1xf32>
      %91 = vector.broadcast %90 : vector<16x1xf32> to vector<16x128xf32>
      %92 = arith.mulf %91, %88 : vector<16x128xf32>
      %cst_51 = arith.constant 0.000000e+00 : f32
      %93 = vector.broadcast %cst_51 : f32 to vector<16x128xf32>
      %94 = arith.cmpf ogt, %92, %93 : vector<16x128xf32>
      %cst_52 = arith.constant 0.00999999977 : f32
      %95 = vector.broadcast %cst_52 : f32 to vector<16x128xf32>
      %96 = arith.mulf %95, %92 : vector<16x128xf32>
      %97 = arith.select %94, %92, %96 : vector<16x128xi1>, vector<16x128xf32>
      %98 = arith.mulf %90, %14 : vector<16x1xf32>
      %cst_53 = arith.constant 9.99999993E-9 : f32
      %99 = vector.broadcast %cst_53 : f32 to vector<16x1xf32>
      %100 = arith.addf %98, %99 : vector<16x1xf32>
      %101 = vector.broadcast %100 : vector<16x1xf32> to vector<16x128xf32>
      %102 = arith.divf %97, %101 : vector<16x128xf32>
      %cst_54 = arith.constant 0.000000e+00 : f32
      %103 = vector.broadcast %cst_54 : f32 to vector<16x128xf32>
      %104 = arith.select %19, %102, %103 : vector<16x128xi1>, vector<16x128xf32>
      %cst_55 = arith.constant dense<0.000000e+00> : vector<16xf32>
      %105 = vector.multi_reduction <add>, %104, %cst_55 [1] : vector<16x128xf32> to vector<16xf32>
      %106 = vector.shape_cast %105 : vector<16xf32> to vector<16x1xf32>
      %cst_56 = arith.constant 3.200000e+01 : f32
      %107 = vector.broadcast %cst_56 : f32 to vector<16x1xf32>
      %108 = arith.divf %106, %107 : vector<16x1xf32>
      %109 = vector.broadcast %108 : vector<16x1xf32> to vector<16x128xf32>
      %110 = arith.subf %102, %109 : vector<16x128xf32>
      %cst_57 = arith.constant 0.000000e+00 : f32
      %111 = vector.broadcast %cst_57 : f32 to vector<16x128xf32>
      %112 = arith.select %19, %110, %111 : vector<16x128xi1>, vector<16x128xf32>
      %113 = arith.mulf %112, %112 : vector<16x128xf32>
      %cst_58 = arith.constant dense<0.000000e+00> : vector<16xf32>
      %114 = vector.multi_reduction <add>, %113, %cst_58 [1] : vector<16x128xf32> to vector<16xf32>
      %115 = vector.shape_cast %114 : vector<16xf32> to vector<16x1xf32>
      %cst_59 = arith.constant 3.200000e+01 : f32
      %116 = vector.broadcast %cst_59 : f32 to vector<16x1xf32>
      %117 = arith.divf %115, %116 : vector<16x1xf32>
      %118 = vector.broadcast %108 : vector<16x1xf32> to vector<16x128xf32>
      %119 = arith.subf %102, %118 : vector<16x128xf32>
      %cst_60 = arith.constant 9.99999974E-6 : f32
      %120 = vector.broadcast %cst_60 : f32 to vector<16x1xf32>
      %121 = arith.addf %117, %120 : vector<16x1xf32>
      %122 = math.rsqrt %121 : vector<16x1xf32>
      %123 = vector.broadcast %122 : vector<16x1xf32> to vector<16x128xf32>
      %124 = arith.mulf %119, %123 : vector<16x128xf32>
      %c1_61 = arith.constant 1 : index
      %c0_62 = arith.constant 0 : index
      %c0_63 = arith.constant 0 : index
      %125 = vector.load %arg10[%c1_61, %c0_62, %c0_63] : memref<2x1x128xf32, #tpu.memory_space<vmem>>, vector<1x1x128xf32>
      %126 = vector.shape_cast %125 : vector<1x1x128xf32> to vector<1x128xf32>
      %127 = vector.broadcast %126 : vector<1x128xf32> to vector<16x128xf32>
      %128 = arith.mulf %124, %127 : vector<16x128xf32>
      %c1_64 = arith.constant 1 : index
      %c0_65 = arith.constant 0 : index
      %c0_66 = arith.constant 0 : index
      %129 = vector.load %arg11[%c1_64, %c0_65, %c0_66] : memref<2x1x128xf32, #tpu.memory_space<vmem>>, vector<1x1x128xf32>
      %130 = vector.shape_cast %129 : vector<1x1x128xf32> to vector<1x128xf32>
      %131 = vector.broadcast %130 : vector<1x128xf32> to vector<16x128xf32>
      %132 = arith.addf %128, %131 : vector<16x128xf32>
      %133 = vector.broadcast %90 : vector<16x1xf32> to vector<16x128xf32>
      %134 = arith.mulf %133, %15 : vector<16x128xf32>
      %135 = arith.addf %134, %132 : vector<16x128xf32>
      %136 = arith.truncf %135 : vector<16x128xf32> to vector<16x128xbf16>
      %c1_67 = arith.constant 1 : index
      %c0_68 = arith.constant 0 : index
      %c0_69 = arith.constant 0 : index
      %137 = vector.load %arg8[%c1_67, %c0_68, %c0_69] : memref<2x128x128xbf16, #tpu.memory_space<vmem>>, vector<1x128x128xbf16>
      %138 = vector.shape_cast %137 : vector<1x128x128xbf16> to vector<128x128xbf16>
      %cst_70 = arith.constant dense<0.000000e+00> : vector<16x128xf32>
      %139 = tpu.matmul %136, %138, %cst_70 {dimension_numbers = #tpu.dot_dimension_numbers<[1], [0], [0], [1], [0, 0, 1, 1], [], []>} : vector<16x128xbf16>, vector<128x128xbf16>, vector<16x128xf32> -> vector<16x128xf32>
      %c1_71 = arith.constant 1 : index
      %c0_72 = arith.constant 0 : index
      %c0_73 = arith.constant 0 : index
      %140 = vector.load %arg9[%c1_71, %c0_72, %c0_73] : memref<2x1x128xf32, #tpu.memory_space<vmem>>, vector<1x1x128xf32>
      %141 = vector.shape_cast %140 : vector<1x1x128xf32> to vector<1x128xf32>
      %142 = vector.broadcast %141 : vector<1x128xf32> to vector<16x128xf32>
      %143 = arith.addf %139, %142 : vector<16x128xf32>
      %cst_74 = arith.constant 0.000000e+00 : f32
      %144 = vector.broadcast %cst_74 : f32 to vector<16x128xf32>
      %145 = arith.maximumf %143, %144 : vector<16x128xf32>
      %cst_75 = arith.constant 0.000000e+00 : f32
      %146 = vector.broadcast %cst_75 : f32 to vector<16x1xf32>
      %147 = arith.cmpf ogt, %90, %146 : vector<16x1xf32>
      %c1_76 = arith.constant 1 : index
      %c0_77 = arith.constant 0 : index
      %c0_78 = arith.constant 0 : index
      %148 = vector.load %arg4[%c1_76, %c0_77, %c0_78] : memref<2x16x128xf32, #tpu.memory_space<vmem>>, vector<1x16x128xf32>
      %149 = vector.shape_cast %148 : vector<1x16x128xf32> to vector<16x128xf32>
      %150 = vector.shape_cast %147 : vector<16x1xi1> to vector<16x1xi1>
      %151 = vector.broadcast %150 : vector<16x1xi1> to vector<16x128xi1>
      %152 = arith.select %151, %145, %149 : vector<16x128xi1>, vector<16x128xf32>
      %c1_79 = arith.constant 1 : index
      %c0_80 = arith.constant 0 : index
      %c0_81 = arith.constant 0 : index
      %153 = vector.load %arg12[%c1_79, %c0_80, %c0_81] : memref<2x16x128xf32, #tpu.memory_space<vmem>>, vector<1x16x128xf32>
      %154 = vector.shape_cast %153 : vector<1x16x128xf32> to vector<16x128xf32>
      %155 = vector.shape_cast %152 : vector<16x128xf32> to vector<1x16x128xf32>
      tpu.vector_store %arg12[%c1_79, %c0_80, %c0_81], %155 {strides = array<i32>} : memref<2x16x128xf32, #tpu.memory_space<vmem>>, vector<1x16x128xf32>,
    } else {
    }
    return
  }
  func.func @transform_0(%arg0: i32, %arg1: i32) -> (i32, i32) {
    %c0_i32 = arith.constant 0 : i32
    %c0_i32_0 = arith.constant 0 : i32
    %c0_i32_1 = arith.constant 0 : i32
    return %c0_i32, %c0_i32_0 : i32, i32
  }
  func.func @transform_1(%arg0: i32, %arg1: i32) -> (i32, i32) {
    %c0_i32 = arith.constant 0 : i32
    return %arg0, %arg1 : i32, i32
  }
  func.func @transform_2(%arg0: i32, %arg1: i32) -> (i32, i32, i32) {
    %c0_i32 = arith.constant 0 : i32
    %c0_i32_0 = arith.constant 0 : i32
    %c0_i32_1 = arith.constant 0 : i32
    return %c0_i32, %arg0, %c0_i32_0 : i32, i32, i32
  }
  func.func @transform_3(%arg0: i32, %arg1: i32) -> (i32, i32, i32) {
    %c0_i32 = arith.constant 0 : i32
    %c0_i32_0 = arith.constant 0 : i32
    %c0_i32_1 = arith.constant 0 : i32
    return %c0_i32, %arg0, %c0_i32_0 : i32, i32, i32
  }
  func.func @transform_4(%arg0: i32, %arg1: i32) -> (i32, i32) {
    %c0_i32 = arith.constant 0 : i32
    %c0_i32_0 = arith.constant 0 : i32
    return %arg0, %c0_i32 : i32, i32
  }
  func.func @transform_5(%arg0: i32, %arg1: i32) -> (i32, i32) {
    %c0_i32 = arith.constant 0 : i32
    %c0_i32_0 = arith.constant 0 : i32
    return %arg0, %c0_i32 : i32, i32
  }
  func.func @transform_6(%arg0: i32, %arg1: i32) -> (i32, i32, i32) {
    %c0_i32 = arith.constant 0 : i32
    %c0_i32_0 = arith.constant 0 : i32
    %c0_i32_1 = arith.constant 0 : i32
    %c0_i32_2 = arith.constant 0 : i32
    return %c0_i32, %c0_i32_0, %c0_i32_1 : i32, i32, i32
  }
  func.func @transform_7(%arg0: i32, %arg1: i32) -> (i32, i32, i32) {
    %c0_i32 = arith.constant 0 : i32
    %c0_i32_0 = arith.constant 0 : i32
    %c0_i32_1 = arith.constant 0 : i32
    %c0_i32_2 = arith.constant 0 : i32
    return %c0_i32, %c0_i32_0, %c0_i32_1 : i32, i32, i32
  }
  func.func @transform_8(%arg0: i32, %arg1: i32) -> (i32, i32, i32) {
    %c0_i32 = arith.constant 0 : i32
    %c0_i32_0 = arith.constant 0 : i32
    %c0_i32_1 = arith.constant 0 : i32
    %c0_i32_2 = arith.constant 0 : i32
    return %c0_i32, %c0_i32_0, %c0_i32_1 : i32, i32, i32
  }
  func.func @transform_9(%arg0: i32, %arg1: i32) -> (i32, i32, i32) {
    %c0_i32 = arith.constant 0 : i32
    %c0_i32_0 = arith.constant 0 : i32
    %c0_i32_1 = arith.constant 0 : i32
    %c0_i32_2 = arith.constant 0 : i32
    return %c0_i32, %c0_i32_0, %c0_i32_1 : i32, i32, i32
  }
  func.func @transform_10(%arg0: i32, %arg1: i32) -> (i32, i32, i32) {
    %c0_i32 = arith.constant 0 : i32
    %c0_i32_0 = arith.constant 0 : i32
    %c0_i32_1 = arith.constant 0 : i32
    return %c0_i32, %arg0, %c0_i32_0 : i32, i32, i32
  }
}

</mosaic_0001>

<llo_original>
// kernel: lagat_forward.4
$region0: #{lagat_forward.4}
  #allocation0 [shape = 'u32[]', space=smem, size = 0x4, offset = 0x4, fixed_abs, tag = 'smem constant byte address 0x4 - core index']
  #allocation1 [shape = 'u32[144,128]{1,0:T(1,128)}', space=vmem, size = 0x12000, scoped, tag = 'internal scratch']
  #allocation2 [shape = 'f32[16,128]{1,0:T(8,128)}', space=vmem, size = 0x2000, scoped, tag = 'scratch operand']
  %s0 = inlined_call_operand.vmem [shape: f32[16,128], index: 0, kind: input, shape index: {}]
  %s1 = inlined_call_operand.vmem [shape: f32[128,128], index: 1, kind: input, shape index: {}]
  %s2 = inlined_call_operand.vmem [shape: f32[16,128], index: 2, kind: output, shape index: {}]
  %s3 = sld [smem:[#allocation0]]
  $region26: #{lagat_forward.4} parent=0
    _
  %s5 = ssub.s32 1, %s3
  %s6 = scalar_select 0, %s5, %s3
  // Predicated region
  $region2: #{lagat_forward.4} parent=0 // pred_check
    _
  $region3: #{lagat_forward.4} parent=0 // pred_check_branch
    %8 = sbr.rel (0) target = $region5
  $region4: #{lagat_forward.4} parent=0 // pred_region
    _
  $region5: #{lagat_forward.4} parent=0 // pred_fallthru
    _
  // Predicated region
  $region6: #{lagat_forward.4} parent=0 // pred_check
    _
  $region7: #{lagat_forward.4} parent=0 // pred_check_branch
    %10 = sbr.rel (0) target = $region9
  $region8: #{lagat_forward.4} parent=0 // pred_region
    _
  $region9: #{lagat_forward.4} parent=0 // pred_fallthru
    _
  %p11 = scmp.eq.s32.totalorder 0, 0
  // Predicated region
  $region10: #{lagat_forward.4} parent=0 // pred_check
    %p12 = pneg %p11
  $region11: #{lagat_forward.4} parent=0 // pred_check_branch
    %14 = sbr.rel (%p12) target = $region13
  $region12: #{lagat_forward.4} parent=0 // pred_region
    %15 = vst [vmem:[#allocation2] sm:$0xff] 0.0
    %16 = vst [vmem:[#allocation2 + $0x8] sm:$0xff] 0.0
  $region13: #{lagat_forward.4} parent=0 // pred_fallthru
    _
  %v17 = vld [vmem:[#allocation2] sm:$0xff]
  %v18 = vld [vmem:[#allocation2 + $0x8] sm:$0xff]
  %v19 = vld [vmem:[%s0] sm:$0xff]
  %v20 = vld [vmem:[%s0 + $0x8] sm:$0xff]
  %v21 = vld [vmem:[%s1] sm:$0xff]
  %v22 = vld [vmem:[%s1 + $0x8] sm:$0xff]
  %v23 = vld [vmem:[%s1 + $0x10] sm:$0xff]
  %v24 = vld [vmem:[%s1 + $0x18] sm:$0xff]
  %v25 = vld [vmem:[%s1 + $0x20] sm:$0xff]
  %v26 = vld [vmem:[%s1 + $0x28] sm:$0xff]
  %v27 = vld [vmem:[%s1 + $0x30] sm:$0xff]
  %v28 = vld [vmem:[%s1 + $0x38] sm:$0xff]
  %v29 = vld [vmem:[%s1 + $0x40] sm:$0xff]
  %v30 = vld [vmem:[%s1 + $0x48] sm:$0xff]
  %v31 = vld [vmem:[%s1 + $0x50] sm:$0xff]
  %v32 = vld [vmem:[%s1 + $0x58] sm:$0xff]
  %v33 = vld [vmem:[%s1 + $0x60] sm:$0xff]
  %v34 = vld [vmem:[%s1 + $0x68] sm:$0xff]
  %v35 = vld [vmem:[%s1 + $0x70] sm:$0xff]
  %v36 = vld [vmem:[%s1 + $0x78] sm:$0xff]
  %37 = vmatprep.subr.mxu0 0.0
  %38 = vmatpush1.msra.mxu0 %v21
  %39 = vmatprep.subr.mxu0 0.0
  %40 = vmatpush1.msra.mxu0 %v22
  %41 = vmatprep.subr.mxu0 0.0
  %42 = vmatpush1.msra.mxu0 %v23
  %43 = vmatprep.subr.mxu0 0.0
  %44 = vmatpush1.msra.mxu0 %v24
  %45 = vmatprep.subr.mxu0 0.0
  %46 = vmatpush1.msra.mxu0 %v25
  %47 = vmatprep.subr.mxu0 0.0
  %48 = vmatpush1.msra.mxu0 %v26
  %49 = vmatprep.subr.mxu0 0.0
  %50 = vmatpush1.msra.mxu0 %v27
  %51 = vmatprep.subr.mxu0 0.0
  %52 = vmatpush1.msra.mxu0 %v28
  %53 = vmatprep.subr.mxu0 0.0
  %54 = vmatpush1.msra.mxu0 %v29
  %55 = vmatprep.subr.mxu0 0.0
  %56 = vmatpush1.msra.mxu0 %v30
  %57 = vmatprep.subr.mxu0 0.0
  %58 = vmatpush1.msra.mxu0 %v31
  %59 = vmatprep.subr.mxu0 0.0
  %60 = vmatpush1.msra.mxu0 %v32
  %61 = vmatprep.subr.mxu0 0.0
  %62 = vmatpush1.msra.mxu0 %v33
  %63 = vmatprep.subr.mxu0 0.0
  %64 = vmatpush1.msra.mxu0 %v34
  %65 = vmatprep.subr.mxu0 0.0
  %66 = vmatpush1.msra.mxu0 %v35
  %67 = vmatprep.subr.mxu0 0.0
  %68 = vmatpush1.msra.mxu0 %v36
  %69 = vmatprep.subr.mxu0 0.0
  %70 = vmatpush1.msra.mxu0 0.0
  %71 = vmatprep.subr.mxu0 0.0
  %72 = vmatpush1.msra.mxu0 0.0
  %73 = vmatprep.subr.mxu0 0.0
  %74 = vmatpush1.msra.mxu0 0.0
  %75 = vmatprep.subr.mxu0 0.0
  %76 = vmatpush1.msra.mxu0 0.0
  %77 = vmatprep.subr.mxu0 0.0
  %78 = vmatpush1.msra.mxu0 0.0
  %79 = vmatprep.subr.mxu0 0.0
  %80 = vmatpush1.msra.mxu0 0.0
  %81 = vmatprep.subr.mxu0 0.0
  %82 = vmatpush1.msra.mxu0 0.0
  %83 = vmatprep.subr.mxu0 0.0
  %84 = vmatpush1.msra.mxu0 0.0
  %85 = vmatprep.subr.mxu0 0.0
  %86 = vmatpush1.msra.mxu0 0.0
  %87 = vmatprep.subr.mxu0 0.0
  %88 = vmatpush1.msra.mxu0 0.0
  %89 = vmatprep.subr.mxu0 0.0
  %90 = vmatpush1.msra.mxu0 0.0
  %91 = vmatprep.subr.mxu0 0.0
  %92 = vmatpush1.msra.mxu0 0.0
  %93 = vmatprep.subr.mxu0 0.0
  %94 = vmatpush1.msra.mxu0 0.0
  %95 = vmatprep.subr.mxu0 0.0
  %96 = vmatpush1.msra.mxu0 0.0
  %97 = vmatprep.subr.mxu0 0.0
  %98 = vmatpush1.msra.mxu0 0.0
  %99 = vmatprep.subr.mxu0 0.0
  %100 = vmatpush1.msra.mxu0 0.0
  %101 = vmatprep.mubr.f32.mxu0 0.0
  %102 = vmatmul.mubr.f32.gmra.mrb[0].mxu0 %v19
  %v103 = vpop.f32.mrb[0].mxu0
  %v104 = vadd.f32 0.0, %v103
  %v105 = vpop.f32.mrb[0].mxu0
  %106 = vmatprep.mubr.f32.mxu0 0.0
  %107 = vmatmul.mubr.f32.gmra.mrb[0].mxu0 %v20
  %v108 = vpop.f32.mrb[0].mxu0
  %v109 = vadd.f32 0.0, %v108
  %v110 = vpop.f32.mrb[0].mxu0
  %111 = vdwg.mxu0
  %v112 = vadd.f32 %v17, %v104
  %v113 = vadd.f32 %v18, %v109
  %114 = vst [vmem:[#allocation2] sm:$0xff] %v112
  %115 = vst [vmem:[#allocation2 + $0x8] sm:$0xff] %v113
  // Predicated region
  $region14: #{lagat_forward.4} parent=0 // pred_check
    %p116 = pneg %p11
  $region15: #{lagat_forward.4} parent=0 // pred_check_branch
    %118 = sbr.rel (%p116) target = $region17
  $region16: #{lagat_forward.4} parent=0 // pred_region
    %v119 = vld [vmem:[#allocation2] sm:$0xff]
    %v120 = vld [vmem:[#allocation2 + $0x8] sm:$0xff]
    %121 = vst [vmem:[%s2] sm:$0xff] %v119
    %122 = vst [vmem:[%s2 + $0x8] sm:$0xff] %v120
  $region17: #{lagat_forward.4} parent=0 // pred_fallthru
    _
  // Predicated region
  $region18: #{lagat_forward.4} parent=0 // pred_check
    _
  $region19: #{lagat_forward.4} parent=0 // pred_check_branch
    %124 = sbr.rel (0) target = $region21
  $region20: #{lagat_forward.4} parent=0 // pred_region
    _
  $region21: #{lagat_forward.4} parent=0 // pred_fallthru
    _
  // Predicated region
  $region22: #{lagat_forward.4} parent=0 // pred_check
    _
  $region23: #{lagat_forward.4} parent=0 // pred_check_branch
    %126 = sbr.rel (0) target = $region25
  $region24: #{lagat_forward.4} parent=0 // pred_region
    _
  $region25: #{lagat_forward.4} parent=0 // pred_fallthru
    _

// kernel: lagat_forward.5
$region0: #{lagat_forward.5}
  #allocation0 [shape = 'u32[]', space=smem, size = 0x4, offset = 0x4, fixed_abs, tag = 'smem constant byte address 0x4 - core index']
  #allocation1 [shape = 'u32[144,128]{1,0:T(1,128)}', space=vmem, size = 0x12000, scoped, tag = 'internal scratch']
  #allocation2 [shape = 'f32[16,16]{1,0:T(8,128)}', space=vmem, size = 0x2000, scoped, tag = 'scratch operand']
  %s0 = inlined_call_operand.vmem [shape: bf16[16,16], index: 0, kind: input, shape index: {}]
  %s1 = inlined_call_operand.vmem [shape: bf16[16,16], index: 1, kind: input, shape index: {}]
  %s2 = inlined_call_operand.vmem [shape: bf16[16,16], index: 2, kind: output, shape index: {}]
  %s3 = sld [smem:[#allocation0]]
  $region30: #{lagat_forward.5} parent=0
    _
  %s5 = ssub.s32 1, %s3
  %s6 = scalar_select 0, %s5, %s3
  // Predicated region
  $region2: #{lagat_forward.5} parent=0 // pred_check
    _
  $region3: #{lagat_forward.5} parent=0 // pred_check_branch
    %8 = sbr.rel (0) target = $region5
  $region4: #{lagat_forward.5} parent=0 // pred_region
    _
  $region5: #{lagat_forward.5} parent=0 // pred_fallthru
    _
  // Predicated region
  $region6: #{lagat_forward.5} parent=0 // pred_check
    _
  $region7: #{lagat_forward.5} parent=0 // pred_check_branch
    %10 = sbr.rel (0) target = $region9
  $region8: #{lagat_forward.5} parent=0 // pred_region
    _
  $region9: #{lagat_forward.5} parent=0 // pred_fallthru
    _
  %s12 = smul.u32 0, 16
  %s13 = smul.u32 0, 16
  %p14 = scmp.eq.s32.totalorder %s12, %s13
  %p15 = scmp.eq.s32.totalorder 0, 0
  // Predicated region
  $region10: #{lagat_forward.5} parent=0 // pred_check
    %p16 = pneg %p15
  $region11: #{lagat_forward.5} parent=0 // pred_check_branch
    %18 = sbr.rel (%p16) target = $region13
  $region12: #{lagat_forward.5} parent=0 // pred_region
    %vm19 = vcmask 130048
    %20 = vst.msk [vmem:[#allocation2] sm:$0xff] %vm19, 0.0
    %21 = vst.msk [vmem:[#allocation2 + $0x8] sm:$0xff] %vm19, 0.0
  $region13: #{lagat_forward.5} parent=0 // pred_fallthru
    _
  %v22 = vld [vmem:[#allocation2] sm:$0xff]
  %v23 = vld [vmem:[#allocation2 + $0x8] sm:$0xff]
  %v24 = vld [vmem:[%s0] sm:$0xf]
  %v25 = vld [vmem:[%s0 + $0x4] sm:$0xf]
  %v26 = vld [vmem:[%s1] sm:$0xf]
  %v27 = vld [vmem:[%s1 + $0x4] sm:$0xf]
  %v30 = vunpack.c.l.b16 %v24
  %v31 = vunpack.c.l.b16 %v25
  %v32 = vpack.c.b16 %v31, %v30
  %v35 = vunpack.c.l.b16 %v26
  %v36 = vunpack.c.l.b16 %v27
  %v37 = vpack.c.b16 %v36, %v35
  %vm39 = vcmask 130048
  %v41 = vsel %vm39, %v32, 0
  %43 = vmatprep.subr.bf16.mxu0 0
  %44 = vmatpush1.bf16.msra.mxu0 %v37
  %45 = vmatprep.subr.bf16.mxu0 0
  %46 = vmatpush1.bf16.msra.mxu0 0
  %47 = vmatprep.subr.bf16.mxu0 0
  %48 = vmatpush1.bf16.msra.mxu0 0
  %49 = vmatprep.subr.bf16.mxu0 0
  %50 = vmatpush1.bf16.msra.mxu0 0
  %51 = vmatprep.subr.bf16.mxu0 0
  %52 = vmatpush1.bf16.msra.mxu0 0
  %53 = vmatprep.subr.bf16.mxu0 0
  %54 = vmatpush1.bf16.msra.mxu0 0
  %55 = vmatprep.subr.bf16.mxu0 0
  %56 = vmatpush1.bf16.msra.mxu0 0
  %57 = vmatprep.subr.bf16.mxu0 0
  %58 = vmatpush1.bf16.msra.mxu0 0
  %59 = vmatprep.subr.bf16.mxu0 0
  %60 = vmatpush1.bf16.msra.mxu0 0
  %61 = vmatprep.subr.bf16.mxu0 0
  %62 = vmatpush1.bf16.msra.mxu0 0
  %63 = vmatprep.subr.bf16.mxu0 0
  %64 = vmatpush1.bf16.msra.mxu0 0
  %65 = vmatprep.subr.bf16.mxu0 0
  %66 = vmatpush1.bf16.msra.mxu0 0
  %67 = vmatprep.subr.bf16.mxu0 0
  %68 = vmatpush1.bf16.msra.mxu0 0
  %69 = vmatprep.subr.bf16.mxu0 0
  %70 = vmatpush1.bf16.msra.mxu0 0
  %71 = vmatprep.subr.bf16.mxu0 0
  %72 = vmatpush1.bf16.msra.mxu0 0
  %73 = vmatprep.subr.bf16.mxu0 0
  %74 = vmatpush1.bf16.msra.mxu0 0
  %75 = vmatprep.mubr.bf16.mxu0 0
  %76 = vmatmul.mubr.bf16.gmra.mrb[0].mxu0 %v41
  %v77 = vpop.f32.mrb[0].mxu0
  %v78 = vadd.f32 0.0, %v77
  %v79 = vpop.f32.mrb[0].mxu0
  %v80 = vpop.f32.mrb[0].mxu0
  %v81 = vadd.f32 0.0, %v80
  %v82 = vpop.f32.mrb[0].mxu0
  %83 = vdwg.mxu0
  %v84 = vadd.f32 %v22, %v78
  %v85 = vadd.f32 %v23, %v81
  %86 = vst.msk [vmem:[#allocation2] sm:$0xff] %vm39, %v84
  %87 = vst.msk [vmem:[#allocation2 + $0x8] sm:$0xff] %vm39, %v85
  %p88 = scmp.ne.s32.totalorder %s12, %s13
  %p89 = pnand %p15, %p88
  %p90 = pneg %p89
  // Predicated region
  $region14: #{lagat_forward.5} parent=0 // pred_check
    _
  $region15: #{lagat_forward.5} parent=0 // pred_check_branch
    %92 = sbr.rel (%p89) target = $region17
  $region16: #{lagat_forward.5} parent=0 // pred_region
    %v93 = vld [vmem:[#allocation2] sm:$0xff]
    %v94 = vld [vmem:[#allocation2 + $0x8] sm:$0xff]
    %vm95 = vcmp.gt.f32.partialorder %v93, 0.0
    %vm96 = vcmp.gt.f32.partialorder %v94, 0.0
    %v97 = vsel %vm95, 1.0, 0.0
    %v98 = vsel %vm96, 1.0, 0.0
    %v99 = vpack.c.bf16 %v98, %v97
    %v101 = vunpack.c.l.b16 %v99
    %v102 = vunpack.c.h.b16 %v99
    %v103 = vpack.c.b16 %v101, %v101
    %v104 = vpack.c.b16 %v102, %v102
    %vm107 = vcmask 125952
    %108 = vst.msk [vmem:[%s2] sm:$0xf] %vm107, %v103
    %109 = vst.msk [vmem:[%s2 + $0x4] sm:$0xf] %vm107, %v104
  $region17: #{lagat_forward.5} parent=0 // pred_fallthru
    _
  %p110 = pnand %p15, %p14
  %p111 = pneg %p110
  // Predicated region
  $region18: #{lagat_forward.5} parent=0 // pred_check
    _
  $region19: #{lagat_forward.5} parent=0 // pred_check_branch
    %113 = sbr.rel (%p110) target = $region21
  $region20: #{lagat_forward.5} parent=0 // pred_region
    %v114 = vld [vmem:[#allocation2] sm:$0xff]
    %v115 = vld [vmem:[#allocation2 + $0x8] sm:$0xff]
    %v116 = vlaneseq
    %v117 = vshrl.u32 %v116, 7
    %v118 = vadd.s32 %v117, 8
    %v119 = vstv %s12
    %v120 = vadd.s32 %v119, %v117
    %v121 = vadd.s32 %v119, %v118
    %v122 = vlaneseq
    %v123 = vand.u32 %v122, 127
    %v124 = vstv %s13
    %v125 = vadd.s32 %v124, %v123
    %vm126 = vcmp.eq.s32.totalorder %v120, %v125
    %vm127 = vcmp.eq.s32.totalorder %v121, %v125
    %vm128 = vcmp.gt.f32.partialorder %v114, 0.0
    %vm129 = vcmp.gt.f32.partialorder %v115, 0.0
    %vm130 = vmor %vm126, %vm128
    %vm131 = vmor %vm127, %vm129
    %v132 = vsel %vm130, 1.0, 0.0
    %v133 = vsel %vm131, 1.0, 0.0
    %v134 = vpack.c.bf16 %v133, %v132
    %v136 = vunpack.c.l.b16 %v134
    %v137 = vunpack.c.h.b16 %v134
    %v138 = vpack.c.b16 %v136, %v136
    %v139 = vpack.c.b16 %v137, %v137
    %vm142 = vcmask 125952
    %143 = vst.msk [vmem:[%s2] sm:$0xf] %vm142, %v138
    %144 = vst.msk [vmem:[%s2 + $0x4] sm:$0xf] %vm142, %v139
  $region21: #{lagat_forward.5} parent=0 // pred_fallthru
    _
  // Predicated region
  $region22: #{lagat_forward.5} parent=0 // pred_check
    _
  $region23: #{lagat_forward.5} parent=0 // pred_check_branch
    %146 = sbr.rel (0) target = $region25
  $region24: #{lagat_forward.5} parent=0 // pred_region
    _
  $region25: #{lagat_forward.5} parent=0 // pred_fallthru
    _
  // Predicated region
  $region26: #{lagat_forward.5} parent=0 // pred_check
    _
  $region27: #{lagat_forward.5} parent=0 // pred_check_branch
    %148 = sbr.rel (0) target = $region29
  $region28: #{lagat_forward.5} parent=0 // pred_region
    _
  $region29: #{lagat_forward.5} parent=0 // pred_fallthru
    _

// kernel: lagat_forward.6
$region0: #{lagat_forward.6}
  #allocation0 [shape = 'u32[]', space=smem, size = 0x4, offset = 0x4, fixed_abs, tag = 'smem constant byte address 0x4 - core index']
  #allocation1 [shape = 'u32[144,128]{1,0:T(1,128)}', space=vmem, size = 0x12000, scoped, tag = 'internal scratch']
  #allocation2 [shape = 'f32[16,256]{1,0:T(8,128)}', space=vmem, size = 0x4000, scoped, tag = 'scratch operand']
  %s0 = inlined_call_operand.vmem [shape: bf16[16,256], index: 0, kind: input, shape index: {}]
  %s1 = inlined_call_operand.vmem [shape: bf16[16,16], index: 1, kind: input, shape index: {}]
  %s2 = inlined_call_operand.vmem [shape: f32[2,16,128], index: 2, kind: input, shape index: {}]
  %s3 = inlined_call_operand.vmem [shape: f32[2,16,1], index: 3, kind: input, shape index: {}]
  %s4 = inlined_call_operand.vmem [shape: f32[16,1], index: 4, kind: input, shape index: {}]
  %s5 = inlined_call_operand.vmem [shape: f32[16,128], index: 5, kind: input, shape index: {}]
  %s6 = inlined_call_operand.vmem [shape: bf16[2,128,128], index: 6, kind: input, shape index: {}]
  %s7 = inlined_call_operand.vmem [shape: f32[2,1,128], index: 7, kind: input, shape index: {}]
  %s8 = inlined_call_operand.vmem [shape: f32[2,1,128], index: 8, kind: input, shape index: {}]
  %s9 = inlined_call_operand.vmem [shape: f32[2,1,128], index: 9, kind: input, shape index: {}]
  %s10 = inlined_call_operand.vmem [shape: f32[2,16,128], index: 10, kind: output, shape index: {}]
  %s11 = sld [smem:[#allocation0]]
  $region58: #{lagat_forward.6} parent=0
    _
  %s13 = ssub.s32 1, %s11
  %s14 = scalar_select 0, %s13, %s11
  // Predicated region
  $region2: #{lagat_forward.6} parent=0 // pred_check
    _
  $region3: #{lagat_forward.6} parent=0 // pred_check_branch
    %16 = sbr.rel (0) target = $region5
  $region4: #{lagat_forward.6} parent=0 // pred_region
    _
  $region5: #{lagat_forward.6} parent=0 // pred_fallthru
    _
  // Predicated region
  $region6: #{lagat_forward.6} parent=0 // pred_check
    _
  $region7: #{lagat_forward.6} parent=0 // pred_check_branch
    %18 = sbr.rel (0) target = $region9
  $region8: #{lagat_forward.6} parent=0 // pred_region
    _
  $region9: #{lagat_forward.6} parent=0 // pred_fallthru
    _
  // Predicated region
  $region10: #{lagat_forward.6} parent=0 // pred_check
    _
  $region11: #{lagat_forward.6} parent=0 // pred_check_branch
    %20 = sbr.rel (0) target = $region13
  $region12: #{lagat_forward.6} parent=0 // pred_region
    _
  $region13: #{lagat_forward.6} parent=0 // pred_fallthru
    _
  // Predicated region
  $region14: #{lagat_forward.6} parent=0 // pred_check
    _
  $region15: #{lagat_forward.6} parent=0 // pred_check_branch
    %22 = sbr.rel (0) target = $region17
  $region16: #{lagat_forward.6} parent=0 // pred_region
    _
  $region17: #{lagat_forward.6} parent=0 // pred_fallthru
    _
  // Predicated region
  $region18: #{lagat_forward.6} parent=0 // pred_check
    _
  $region19: #{lagat_forward.6} parent=0 // pred_check_branch
    %24 = sbr.rel (0) target = $region21
  $region20: #{lagat_forward.6} parent=0 // pred_region
    _
  $region21: #{lagat_forward.6} parent=0 // pred_fallthru
    _
  // Predicated region
  $region22: #{lagat_forward.6} parent=0 // pred_check
    _
  $region23: #{lagat_forward.6} parent=0 // pred_check_branch
    %26 = sbr.rel (0) target = $region25
  $region24: #{lagat_forward.6} parent=0 // pred_region
    _
  $region25: #{lagat_forward.6} parent=0 // pred_fallthru
    _
  // Predicated region
  $region26: #{lagat_forward.6} parent=0 // pred_check
    _
  $region27: #{lagat_forward.6} parent=0 // pred_check_branch
    %28 = sbr.rel (0) target = $region29
  $region28: #{lagat_forward.6} parent=0 // pred_region
    _
  $region29: #{lagat_forward.6} parent=0 // pred_fallthru
    _
  // Predicated region
  $region30: #{lagat_forward.6} parent=0 // pred_check
    _
  $region31: #{lagat_forward.6} parent=0 // pred_check_branch
    %30 = sbr.rel (0) target = $region33
  $region32: #{lagat_forward.6} parent=0 // pred_region
    _
  $region33: #{lagat_forward.6} parent=0 // pred_fallthru
    _
  // Predicated region
  $region34: #{lagat_forward.6} parent=0 // pred_check
    _
  $region35: #{lagat_forward.6} parent=0 // pred_check_branch
    %32 = sbr.rel (0) target = $region37
  $region36: #{lagat_forward.6} parent=0 // pred_region
    _
  $region37: #{lagat_forward.6} parent=0 // pred_fallthru
    _
  // Predicated region
  $region38: #{lagat_forward.6} parent=0 // pred_check
    _
  $region39: #{lagat_forward.6} parent=0 // pred_check_branch
    %34 = sbr.rel (0) target = $region41
  $region40: #{lagat_forward.6} parent=0 // pred_region
    _
  $region41: #{lagat_forward.6} parent=0 // pred_fallthru
    _
  %p36 = scmp.eq.s32.totalorder 0, 0
  // Predicated region
  $region42: #{lagat_forward.6} parent=0 // pred_check
    %p37 = pneg %p36
  $region43: #{lagat_forward.6} parent=0 // pred_check_branch
    %39 = sbr.rel (%p37) target = $region45
  $region44: #{lagat_forward.6} parent=0 // pred_region
    %40 = vst [vmem:[#allocation2] sm:$0xff] 0.0
    %41 = vst [vmem:[#allocation2 + $0x8] sm:$0xff] 0.0
    %42 = vst [vmem:[#allocation2 + $0x10] sm:$0xff] 0.0
    %43 = vst [vmem:[#allocation2 + $0x18] sm:$0xff] 0.0
  $region45: #{lagat_forward.6} parent=0 // pred_fallthru
    _
  %s44 = smul.u32 0, 16
  %s45 = sshra.s32 %s44, 3
  %s46 = sand.u32 %s44, 7
  %s47 = smul.u32 %s45, 2
  %s48 = smul.addr %s47, 4
  %s49 = scalar_lea.vmem %s0, %s48
  %v50 = vld [vmem:[%s49] sm:$0xff]
  %v51 = vld [vmem:[%s49 + $0x8] sm:$0xff]
  %v52 = vld [vmem:[#allocation2] sm:$0xff]
  %v53 = vld [vmem:[#allocation2 + $0x8] sm:$0xff]
  %v54 = vld [vmem:[#allocation2 + $0x10] sm:$0xff]
  %v55 = vld [vmem:[#allocation2 + $0x18] sm:$0xff]
  %v56 = vld [vmem:[%s1] sm:$0xf]
  %v57 = vld [vmem:[%s1 + $0x4] sm:$0xf]
  %v60 = vunpack.c.l.b16 %v56
  %v61 = vunpack.c.l.b16 %v57
  %v62 = vpack.c.b16 %v61, %v60
  %v65 = vunpack.c.l.b16 %v50
  %v66 = vunpack.c.h.b16 %v50
  %v67 = vunpack.c.l.b16 %v51
  %v68 = vunpack.c.h.b16 %v51
  %v69 = vpack.c.b16 %v67, %v65
  %v70 = vpack.c.b16 %v68, %v66
  %vm73 = vcmask 130048
  %v75 = vsel %vm73, %v62, 0
  %77 = vmatprep.subr.bf16.mxu0 %v70
  %78 = vmatpush1.bf16.msra.mxu0 %v69
  %79 = vmatprep.subr.bf16.mxu0 0
  %80 = vmatpush1.bf16.msra.mxu0 0
  %81 = vmatprep.subr.bf16.mxu0 0
  %82 = vmatpush1.bf16.msra.mxu0 0
  %83 = vmatprep.subr.bf16.mxu0 0
  %84 = vmatpush1.bf16.msra.mxu0 0
  %85 = vmatprep.subr.bf16.mxu0 0
  %86 = vmatpush1.bf16.msra.mxu0 0
  %87 = vmatprep.subr.bf16.mxu0 0
  %88 = vmatpush1.bf16.msra.mxu0 0
  %89 = vmatprep.subr.bf16.mxu0 0
  %90 = vmatpush1.bf16.msra.mxu0 0
  %91 = vmatprep.subr.bf16.mxu0 0
  %92 = vmatpush1.bf16.msra.mxu0 0
  %93 = vmatprep.subr.bf16.mxu0 0
  %94 = vmatpush1.bf16.msra.mxu0 0
  %95 = vmatprep.subr.bf16.mxu0 0
  %96 = vmatpush1.bf16.msra.mxu0 0
  %97 = vmatprep.subr.bf16.mxu0 0
  %98 = vmatpush1.bf16.msra.mxu0 0
  %99 = vmatprep.subr.bf16.mxu0 0
  %100 = vmatpush1.bf16.msra.mxu0 0
  %101 = vmatprep.subr.bf16.mxu0 0
  %102 = vmatpush1.bf16.msra.mxu0 0
  %103 = vmatprep.subr.bf16.mxu0 0
  %104 = vmatpush1.bf16.msra.mxu0 0
  %105 = vmatprep.subr.bf16.mxu0 0
  %106 = vmatpush1.bf16.msra.mxu0 0
  %107 = vmatprep.subr.bf16.mxu0 0
  %108 = vmatpush1.bf16.msra.mxu0 0
  %109 = vmatprep.mubr.bf16.mxu0 0
  %110 = vmatmul.mubr.bf16.gmra.mrb[0].mxu0 %v75
  %v111 = vpop.f32.mrb[0].mxu0
  %v112 = vadd.f32 0.0, %v111
  %v113 = vpop.f32.mrb[0].mxu0
  %v114 = vadd.f32 0.0, %v113
  %v115 = vpop.f32.mrb[0].mxu0
  %v116 = vadd.f32 0.0, %v115
  %v117 = vpop.f32.mrb[0].mxu0
  %v118 = vadd.f32 0.0, %v117
  %119 = vdwg.mxu0
  %v120 = vadd.f32 %v52, %v112
  %v121 = vadd.f32 %v53, %v114
  %v122 = vadd.f32 %v54, %v116
  %v123 = vadd.f32 %v55, %v118
  %124 = vst [vmem:[#allocation2] sm:$0xff] %v120
  %125 = vst [vmem:[#allocation2 + $0x8] sm:$0xff] %v121
  %126 = vst [vmem:[#allocation2 + $0x10] sm:$0xff] %v122
  %127 = vst [vmem:[#allocation2 + $0x18] sm:$0xff] %v123
  // Predicated region
  $region46: #{lagat_forward.6} parent=0 // pred_check
    %p128 = pneg %p36
  $region47: #{lagat_forward.6} parent=0 // pred_check_branch
    %130 = sbr.rel (%p128) target = $region49
  $region48: #{lagat_forward.6} parent=0 // pred_region
    %v131 = vld [vmem:[%s4] sm:$0xff]
    %v132 = vld [vmem:[%s4 + $0x8] sm:$0xff]
    %v133 = vld [vmem:[%s5] sm:$0xff]
    %v134 = vld [vmem:[%s5 + $0x8] sm:$0xff]
    %v135 = vld [vmem:[#allocation2] sm:$0xff]
    %v136 = vld [vmem:[#allocation2 + $0x8] sm:$0xff]
    %v137 = vld [vmem:[#allocation2 + $0x10] sm:$0xff]
    %v138 = vld [vmem:[#allocation2 + $0x18] sm:$0xff]
    %v139 = vlaneseq
    %v140 = vand.u32 %v139, 127
    %vm141 = vcmp.lt.s32.totalorder %v140, 32
    %v142 = vld [vmem:[%s3] sm:$0xff]
    %v143 = vld [vmem:[%s3 + $0x8] sm:$0xff]
    %145 = vset.pattern.permute.xlu0 0
    %146 = vperm.xlu0 %145, %v142
    %v147 = vpop.permute.xlu0 %146
    %150 = vset.pattern.permute.xlu0 0
    %151 = vperm.xlu0 %150, %v143
    %v152 = vpop.permute.xlu0 %151
    %v154 = vmul.f32 %v147, %v135
    %v155 = vmul.f32 %v152, %v137
    %vm156 = vcmp.gt.f32.partialorder %v154, 0.0
    %vm157 = vcmp.gt.f32.partialorder %v155, 0.0
    %v158 = vmul.f32 %v154, 0.01
    %v159 = vmul.f32 %v155, 0.01
    %v160 = vsel %vm156, %v154, %v158
    %v161 = vsel %vm157, %v155, %v159
    %v162 = vmul.f32 %v142, %v131
    %v163 = vmul.f32 %v143, %v132
    %v164 = vadd.f32 %v162, 1e-08
    %v165 = vadd.f32 %v163, 1e-08
    %167 = vset.pattern.permute.xlu0 0
    %168 = vperm.xlu0 %167, %v164
    %v169 = vpop.permute.xlu0 %168
    %172 = vset.pattern.permute.xlu0 0
    %173 = vperm.xlu0 %172, %v165
    %v174 = vpop.permute.xlu0 %173
    %v176 = vrcp.pop %v169
    %v177 = vmul.f32 %v160, %v176
    %v178 = vrcp.pop %v174
    %v179 = vmul.f32 %v161, %v178
    %v180 = vsel %vm141, %v177, 0.0
    %v181 = vsel %vm141, %v179, 0.0
    %182 = vadd.xlane.f32.xlu0 %v180
    %v183 = vpop.xlane.xlu0 %182
    %184 = vadd.xlane.f32.xlu0 %v181
    %v185 = vpop.xlane.xlu0 %184
    %v186 = vrcp.pop 32.0
    %v187 = vmul.f32 %v183, %v186
    %v188 = vmul.f32 %v185, %v186
    %v189 = vsub.f32 %v177, %v187
    %v190 = vsub.f32 %v179, %v188
    %v191 = vsel %vm141, %v189, 0.0
    %v192 = vsel %vm141, %v190, 0.0
    %v193 = vmul.f32 %v191, %v191
    %v194 = vmul.f32 %v192, %v192
    %195 = vadd.xlane.f32.xlu0 %v193
    %v196 = vpop.xlane.xlu0 %195
    %197 = vadd.xlane.f32.xlu0 %v194
    %v198 = vpop.xlane.xlu0 %197
    %v199 = vmul.f32 %v196, %v186
    %v200 = vmul.f32 %v198, %v186
    %v201 = vadd.f32 %v199, 1e-05
    %v202 = vadd.f32 %v200, 1e-05
    %v203 = vrsqrt.pop %v201
    %v204 = vrsqrt.pop %v202
    %v205 = vmul.f32 %v189, %v203
    %v206 = vmul.f32 %v190, %v204
    %v207 = vld [vmem:[%s8] sm:$0x1]
    %v209 = vlaneseq
    %v210 = vshrl.u32 %v209, 7
    %v211 = vsub.s32 0, %v210
    %v212 = vrot.slane %v207, %v211
    %v214 = vmul.f32 %v205, %v212
    %v215 = vmul.f32 %v206, %v212
    %v216 = vld [vmem:[%s9] sm:$0x1]
    %v218 = vlaneseq
    %v219 = vshrl.u32 %v218, 7
    %v220 = vsub.s32 0, %v219
    %v221 = vrot.slane %v216, %v220
    %v223 = vadd.f32 %v214, %v221
    %v224 = vadd.f32 %v215, %v221
    %v225 = vmul.f32 %v147, %v133
    %v226 = vmul.f32 %v152, %v134
    %v227 = vadd.f32 %v225, %v223
    %v228 = vadd.f32 %v226, %v224
    %v229 = vpack.c.bf16 %v228, %v227
    %v230 = vld [vmem:[%s6] sm:$0xf]
    %v231 = vld [vmem:[%s6 + $0x4] sm:$0xf]
    %v232 = vld [vmem:[%s6 + $0x8] sm:$0xf]
    %v233 = vld [vmem:[%s6 + $0xc] sm:$0xf]
    %v234 = vld [vmem:[%s6 + $0x10] sm:$0xf]
    %v235 = vld [vmem:[%s6 + $0x14] sm:$0xf]
    %v236 = vld [vmem:[%s6 + $0x18] sm:$0xf]
    %v237 = vld [vmem:[%s6 + $0x1c] sm:$0xf]
    %v238 = vld [vmem:[%s6 + $0x20] sm:$0xf]
    %v239 = vld [vmem:[%s6 + $0x24] sm:$0xf]
    %v240 = vld [vmem:[%s6 + $0x28] sm:$0xf]
    %v241 = vld [vmem:[%s6 + $0x2c] sm:$0xf]
    %v242 = vld [vmem:[%s6 + $0x30] sm:$0xf]
    %v243 = vld [vmem:[%s6 + $0x34] sm:$0xf]
    %v244 = vld [vmem:[%s6 + $0x38] sm:$0xf]
    %v245 = vld [vmem:[%s6 + $0x3c] sm:$0xf]
    %v246 = vld [vmem:[%s7] sm:$0x1]
    %v248 = vlaneseq
    %v249 = vshrl.u32 %v248, 7
    %v250 = vsub.s32 0, %v249
    %v251 = vrot.slane %v246, %v250
    %v269 = vunpack.c.l.b16 %v230
    %v270 = vunpack.c.l.b16 %v231
    %v271 = vunpack.c.l.b16 %v232
    %v272 = vunpack.c.l.b16 %v233
    %v273 = vunpack.c.l.b16 %v234
    %v274 = vunpack.c.l.b16 %v235
    %v275 = vunpack.c.l.b16 %v236
    %v276 = vunpack.c.l.b16 %v237
    %v277 = vunpack.c.l.b16 %v238
    %v278 = vunpack.c.l.b16 %v239
    %v279 = vunpack.c.l.b16 %v240
    %v280 = vunpack.c.l.b16 %v241
    %v281 = vunpack.c.l.b16 %v242
    %v282 = vunpack.c.l.b16 %v243
    %v283 = vunpack.c.l.b16 %v244
    %v284 = vunpack.c.l.b16 %v245
    %v285 = vpack.c.b16 %v270, %v269
    %v286 = vpack.c.b16 %v272, %v271
    %v287 = vpack.c.b16 %v274, %v273
    %v288 = vpack.c.b16 %v276, %v275
    %v289 = vpack.c.b16 %v278, %v277
    %v290 = vpack.c.b16 %v280, %v279
    %v291 = vpack.c.b16 %v282, %v281
    %v292 = vpack.c.b16 %v284, %v283
    %301 = vmatprep.subr.bf16.mxu0 0
    %302 = vmatpush1.bf16.msra.mxu0 %v285
    %303 = vmatprep.subr.bf16.mxu0 0
    %304 = vmatpush1.bf16.msra.mxu0 %v286
    %305 = vmatprep.subr.bf16.mxu0 0
    %306 = vmatpush1.bf16.msra.mxu0 %v287
    %307 = vmatprep.subr.bf16.mxu0 0
    %308 = vmatpush1.bf16.msra.mxu0 %v288
    %309 = vmatprep.subr.bf16.mxu0 0
    %310 = vmatpush1.bf16.msra.mxu0 %v289
    %311 = vmatprep.subr.bf16.mxu0 0
    %312 = vmatpush1.bf16.msra.mxu0 %v290
    %313 = vmatprep.subr.bf16.mxu0 0
    %314 = vmatpush1.bf16.msra.mxu0 %v291
    %315 = vmatprep.subr.bf16.mxu0 0
    %316 = vmatpush1.bf16.msra.mxu0 %v292
    %317 = vmatprep.subr.bf16.mxu0 0
    %318 = vmatpush1.bf16.msra.mxu0 0
    %319 = vmatprep.subr.bf16.mxu0 0
    %320 = vmatpush1.bf16.msra.mxu0 0
    %321 = vmatprep.subr.bf16.mxu0 0
    %322 = vmatpush1.bf16.msra.mxu0 0
    %323 = vmatprep.subr.bf16.mxu0 0
    %324 = vmatpush1.bf16.msra.mxu0 0
    %325 = vmatprep.subr.bf16.mxu0 0
    %326 = vmatpush1.bf16.msra.mxu0 0
    %327 = vmatprep.subr.bf16.mxu0 0
    %328 = vmatpush1.bf16.msra.mxu0 0
    %329 = vmatprep.subr.bf16.mxu0 0
    %330 = vmatpush1.bf16.msra.mxu0 0
    %331 = vmatprep.subr.bf16.mxu0 0
    %332 = vmatpush1.bf16.msra.mxu0 0
    %333 = vmatprep.mubr.bf16.mxu0 0
    %334 = vmatmul.mubr.bf16.gmra.mrb[0].mxu0 %v229
    %v335 = vpop.f32.mrb[0].mxu0
    %v336 = vadd.f32 %v251, %v335
    %v337 = vpop.f32.mrb[0].mxu0
    %v338 = vpop.f32.mrb[0].mxu0
    %v339 = vadd.f32 %v251, %v338
    %v340 = vpop.f32.mrb[0].mxu0
    %341 = vdwg.mxu0
    %v342 = vmax.f32 %v336, 0.0
    %v343 = vmax.f32 %v339, 0.0
    %vm344 = vcmp.gt.f32.partialorder %v142, 0.0
    %vm345 = vcmp.gt.f32.partialorder %v143, 0.0
    %v346 = vld [vmem:[%s2] sm:$0xff]
    %v347 = vld [vmem:[%s2 + $0x8] sm:$0xff]
    %v348 = vsel %vm344, 1, 0
    %v349 = vsel %vm345, 1, 0
    %350 = vset.pattern.permute.xlu0 0
    %351 = vperm.xlu0 %350, %v348
    %v352 = vpop.permute.xlu0 %351
    %353 = vset.pattern.permute.xlu0 0
    %354 = vperm.xlu0 %353, %v349
    %v355 = vpop.permute.xlu0 %354
    %vm356 = vcmp.eq.s32.totalorder %v352, 1
    %vm357 = vcmp.eq.s32.totalorder %v355, 1
    %v358 = vsel %vm356, %v342, %v346
    %v359 = vsel %vm357, %v343, %v347
    %360 = vst [vmem:[%s10] sm:$0xff] %v358
    %361 = vst [vmem:[%s10 + $0x8] sm:$0xff] %v359
    %s362 = scalar_lea.vmem %s3, 16
    %v363 = vld [vmem:[%s362] sm:$0xff]
    %v364 = vld [vmem:[%s362 + $0x8] sm:$0xff]
    %366 = vset.pattern.permute.xlu0 0
    %367 = vperm.xlu0 %366, %v363
    %v368 = vpop.permute.xlu0 %367
    %371 = vset.pattern.permute.xlu0 0
    %372 = vperm.xlu0 %371, %v364
    %v373 = vpop.permute.xlu0 %372
    %v375 = vmul.f32 %v368, %v136
    %v376 = vmul.f32 %v373, %v138
    %vm377 = vcmp.gt.f32.partialorder %v375, 0.0
    %vm378 = vcmp.gt.f32.partialorder %v376, 0.0
    %v379 = vmul.f32 %v375, 0.01
    %v380 = vmul.f32 %v376, 0.01
    %v381 = vsel %vm377, %v375, %v379
    %v382 = vsel %vm378, %v376, %v380
    %v383 = vmul.f32 %v363, %v131
    %v384 = vmul.f32 %v364, %v132
    %v385 = vadd.f32 %v383, 1e-08
    %v386 = vadd.f32 %v384, 1e-08
    %388 = vset.pattern.permute.xlu0 0
    %389 = vperm.xlu0 %388, %v385
    %v390 = vpop.permute.xlu0 %389
    %393 = vset.pattern.permute.xlu0 0
    %394 = vperm.xlu0 %393, %v386
    %v395 = vpop.permute.xlu0 %394
    %v397 = vrcp.pop %v390
    %v398 = vmul.f32 %v381, %v397
    %v399 = vrcp.pop %v395
    %v400 = vmul.f32 %v382, %v399
    %v401 = vsel %vm141, %v398, 0.0
    %v402 = vsel %vm141, %v400, 0.0
    %403 = vadd.xlane.f32.xlu0 %v401
    %v404 = vpop.xlane.xlu0 %403
    %405 = vadd.xlane.f32.xlu0 %v402
    %v406 = vpop.xlane.xlu0 %405
    %v407 = vmul.f32 %v404, %v186
    %v408 = vmul.f32 %v406, %v186
    %v409 = vsub.f32 %v398, %v407
    %v410 = vsub.f32 %v400, %v408
    %v411 = vsel %vm141, %v409, 0.0
    %v412 = vsel %vm141, %v410, 0.0
    %v413 = vmul.f32 %v411, %v411
    %v414 = vmul.f32 %v412, %v412
    %415 = vadd.xlane.f32.xlu0 %v413
    %v416 = vpop.xlane.xlu0 %415
    %417 = vadd.xlane.f32.xlu0 %v414
    %v418 = vpop.xlane.xlu0 %417
    %v419 = vmul.f32 %v416, %v186
    %v420 = vmul.f32 %v418, %v186
    %v421 = vadd.f32 %v419, 1e-05
    %v422 = vadd.f32 %v420, 1e-05
    %v423 = vrsqrt.pop %v421
    %v424 = vrsqrt.pop %v422
    %v425 = vmul.f32 %v409, %v423
    %v426 = vmul.f32 %v410, %v424
    %s427 = scalar_lea.vmem %s8, 1
    %v428 = vld [vmem:[%s427] sm:$0x1]
    %v430 = vlaneseq
    %v431 = vshrl.u32 %v430, 7
    %v432 = vsub.s32 0, %v431
    %v433 = vrot.slane %v428, %v432
    %v435 = vmul.f32 %v425, %v433
    %v436 = vmul.f32 %v426, %v433
    %s437 = scalar_lea.vmem %s9, 1
    %v438 = vld [vmem:[%s437] sm:$0x1]
    %v440 = vlaneseq
    %v441 = vshrl.u32 %v440, 7
    %v442 = vsub.s32 0, %v441
    %v443 = vrot.slane %v438, %v442
    %v445 = vadd.f32 %v435, %v443
    %v446 = vadd.f32 %v436, %v443
    %v447 = vmul.f32 %v368, %v133
    %v448 = vmul.f32 %v373, %v134
    %v449 = vadd.f32 %v447, %v445
    %v450 = vadd.f32 %v448, %v446
    %v451 = vpack.c.bf16 %v450, %v449
    %s452 = scalar_lea.vmem %s6, 64
    %v453 = vld [vmem:[%s452] sm:$0xf]
    %v454 = vld [vmem:[%s452 + $0x4] sm:$0xf]
    %v455 = vld [vmem:[%s452 + $0x8] sm:$0xf]
    %v456 = vld [vmem:[%s452 + $0xc] sm:$0xf]
    %v457 = vld [vmem:[%s452 + $0x10] sm:$0xf]
    %v458 = vld [vmem:[%s452 + $0x14] sm:$0xf]
    %v459 = vld [vmem:[%s452 + $0x18] sm:$0xf]
    %v460 = vld [vmem:[%s452 + $0x1c] sm:$0xf]
    %v461 = vld [vmem:[%s452 + $0x20] sm:$0xf]
    %v462 = vld [vmem:[%s452 + $0x24] sm:$0xf]
    %v463 = vld [vmem:[%s452 + $0x28] sm:$0xf]
    %v464 = vld [vmem:[%s452 + $0x2c] sm:$0xf]
    %v465 = vld [vmem:[%s452 + $0x30] sm:$0xf]
    %v466 = vld [vmem:[%s452 + $0x34] sm:$0xf]
    %v467 = vld [vmem:[%s452 + $0x38] sm:$0xf]
    %v468 = vld [vmem:[%s452 + $0x3c] sm:$0xf]
    %s469 = scalar_lea.vmem %s7, 1
    %v470 = vld [vmem:[%s469] sm:$0x1]
    %v472 = vlaneseq
    %v473 = vshrl.u32 %v472, 7
    %v474 = vsub.s32 0, %v473
    %v475 = vrot.slane %v470, %v474
    %v493 = vunpack.c.l.b16 %v453
    %v494 = vunpack.c.l.b16 %v454
    %v495 = vunpack.c.l.b16 %v455
    %v496 = vunpack.c.l.b16 %v456
    %v497 = vunpack.c.l.b16 %v457
    %v498 = vunpack.c.l.b16 %v458
    %v499 = vunpack.c.l.b16 %v459
    %v500 = vunpack.c.l.b16 %v460
    %v501 = vunpack.c.l.b16 %v461
    %v502 = vunpack.c.l.b16 %v462
    %v503 = vunpack.c.l.b16 %v463
    %v504 = vunpack.c.l.b16 %v464
    %v505 = vunpack.c.l.b16 %v465
    %v506 = vunpack.c.l.b16 %v466
    %v507 = vunpack.c.l.b16 %v467
    %v508 = vunpack.c.l.b16 %v468
    %v509 = vpack.c.b16 %v494, %v493
    %v510 = vpack.c.b16 %v496, %v495
    %v511 = vpack.c.b16 %v498, %v497
    %v512 = vpack.c.b16 %v500, %v499
    %v513 = vpack.c.b16 %v502, %v501
    %v514 = vpack.c.b16 %v504, %v503
    %v515 = vpack.c.b16 %v506, %v505
    %v516 = vpack.c.b16 %v508, %v507
    %525 = vmatprep.subr.bf16.mxu0 0
    %526 = vmatpush1.bf16.msra.mxu0 %v509
    %527 = vmatprep.subr.bf16.mxu0 0
    %528 = vmatpush1.bf16.msra.mxu0 %v510
    %529 = vmatprep.subr.bf16.mxu0 0
    %530 = vmatpush1.bf16.msra.mxu0 %v511
    %531 = vmatprep.subr.bf16.mxu0 0
    %532 = vmatpush1.bf16.msra.mxu0 %v512
    %533 = vmatprep.subr.bf16.mxu0 0
    %534 = vmatpush1.bf16.msra.mxu0 %v513
    %535 = vmatprep.subr.bf16.mxu0 0
    %536 = vmatpush1.bf16.msra.mxu0 %v514
    %537 = vmatprep.subr.bf16.mxu0 0
    %538 = vmatpush1.bf16.msra.mxu0 %v515
    %539 = vmatprep.subr.bf16.mxu0 0
    %540 = vmatpush1.bf16.msra.mxu0 %v516
    %541 = vmatprep.subr.bf16.mxu0 0
    %542 = vmatpush1.bf16.msra.mxu0 0
    %543 = vmatprep.subr.bf16.mxu0 0
    %544 = vmatpush1.bf16.msra.mxu0 0
    %545 = vmatprep.subr.bf16.mxu0 0
    %546 = vmatpush1.bf16.msra.mxu0 0
    %547 = vmatprep.subr.bf16.mxu0 0
    %548 = vmatpush1.bf16.msra.mxu0 0
    %549 = vmatprep.subr.bf16.mxu0 0
    %550 = vmatpush1.bf16.msra.mxu0 0
    %551 = vmatprep.subr.bf16.mxu0 0
    %552 = vmatpush1.bf16.msra.mxu0 0
    %553 = vmatprep.subr.bf16.mxu0 0
    %554 = vmatpush1.bf16.msra.mxu0 0
    %555 = vmatprep.subr.bf16.mxu0 0
    %556 = vmatpush1.bf16.msra.mxu0 0
    %557 = vmatprep.mubr.bf16.mxu0 0
    %558 = vmatmul.mubr.bf16.gmra.mrb[0].mxu0 %v451
    %v559 = vpop.f32.mrb[0].mxu0
    %v560 = vadd.f32 %v475, %v559
    %v561 = vpop.f32.mrb[0].mxu0
    %v562 = vpop.f32.mrb[0].mxu0
    %v563 = vadd.f32 %v475, %v562
    %v564 = vpop.f32.mrb[0].mxu0
    %565 = vdwg.mxu0
    %v566 = vmax.f32 %v560, 0.0
    %v567 = vmax.f32 %v563, 0.0
    %vm568 = vcmp.gt.f32.partialorder %v363, 0.0
    %vm569 = vcmp.gt.f32.partialorder %v364, 0.0
    %s570 = scalar_lea.vmem %s2, 16
    %v571 = vld [vmem:[%s570] sm:$0xff]
    %v572 = vld [vmem:[%s570 + $0x8] sm:$0xff]
    %v573 = vsel %vm568, 1, 0
    %v574 = vsel %vm569, 1, 0
    %575 = vset.pattern.permute.xlu0 0
    %576 = vperm.xlu0 %575, %v573
    %v577 = vpop.permute.xlu0 %576
    %578 = vset.pattern.permute.xlu0 0
    %579 = vperm.xlu0 %578, %v574
    %v580 = vpop.permute.xlu0 %579
    %vm581 = vcmp.eq.s32.totalorder %v577, 1
    %vm582 = vcmp.eq.s32.totalorder %v580, 1
    %v583 = vsel %vm581, %v566, %v571
    %v584 = vsel %vm582, %v567, %v572
    %s585 = scalar_lea.vmem %s10, 16
    %586 = vst [vmem:[%s585] sm:$0xff] %v583
    %587 = vst [vmem:[%s585 + $0x8] sm:$0xff] %v584
  $region49: #{lagat_forward.6} parent=0 // pred_fallthru
    _
  // Predicated region
  $region50: #{lagat_forward.6} parent=0 // pred_check
    _
  $region51: #{lagat_forward.6} parent=0 // pred_check_branch
    %589 = sbr.rel (0) target = $region53
  $region52: #{lagat_forward.6} parent=0 // pred_region
    _
  $region53: #{lagat_forward.6} parent=0 // pred_fallthru
    _
  // Predicated region
  $region54: #{lagat_forward.6} parent=0 // pred_check
    _
  $region55: #{lagat_forward.6} parent=0 // pred_check_branch
    %591 = sbr.rel (0) target = $region57
  $region56: #{lagat_forward.6} parent=0 // pred_region
    _
  $region57: #{lagat_forward.6} parent=0 // pred_fallthru
    _

</llo_original>
